<compile_context>
chip_gen: v7x
topology: tpu7x:2x2x1
jax: 0.10.0
libtpu: 0.0.40
codegen_flags: <defaults>
</compile_context>

<pallas_src>
import numpy as np

import jax
import jax.numpy as jnp
from jax import lax
from jax.experimental import pallas as pl
from jax.experimental.pallas import tpu as pltpu


# ------------------------------ fused kernel ------------------------------- #

def _fused_convnet_kernel(xp_ref, w1_ref, b1_ref,
                          rpe_ref, rpo_ref, cpe_ref, cpo_ref,
                          rsh_ref, w2_ref, b2_ref,
                          wfc_ref, bfc_ref, out_ref):
    """One batch element per grid step; everything stays on-chip.

    Layouts (all 2-D, lane-dense):
      xp_ref  : (1, H+2, (W+2)*Cin)   padded input, row-folded NHWC
      conv1   : (H,   W*C1)  = (16, 128)
      pooled  : (H/2, W/2*C1)= (8,  64)
      conv2   : (H/2, W/2*C2)= (8, 128)
      out     : (1, 1, num_classes)
    """
    kh = w1_ref.shape[0]                       # 3 taps in h
    h1 = xp_ref.shape[1] - (kh - 1)            # conv1 output rows (16)

    # ---- conv1 (3x3, pad 1) as kh shifted banded matmuls + bias + ReLU ----
    xw = xp_ref[0]                                            # (18, 72)
    acc1 = jnp.zeros((h1, w1_ref.shape[2]), jnp.float32)      # (16, 128)
    for i in range(kh):
        acc1 = acc1 + jnp.dot(xw[i:i + h1, :], w1_ref[i],
                              preferred_element_type=jnp.float32)
    y1 = jnp.maximum(acc1 + b1_ref[...], 0.0)                 # (16, 128)

    # ---- 2x2/2 max-pool: row/col pair picks via 0/1 selection matmuls ----
    hmax = jnp.maximum(
        jnp.dot(rpe_ref[...], y1, preferred_element_type=jnp.float32),
        jnp.dot(rpo_ref[...], y1, preferred_element_type=jnp.float32))    # (8,128)
    pooled = jnp.maximum(
        jnp.dot(hmax, cpe_ref[...], preferred_element_type=jnp.float32),
        jnp.dot(hmax, cpo_ref[...], preferred_element_type=jnp.float32))  # (8, 64)

    # ---- conv2 (3x3, pad 1): h-pad via shift matrices, w-pad folded in W ----
    acc2 = jnp.zeros((rsh_ref.shape[1], w2_ref.shape[2]), jnp.float32)    # (8,128)
    for i in range(kh):
        shifted = jnp.dot(rsh_ref[i], pooled,
                          preferred_element_type=jnp.float32)             # (8, 64)
        acc2 = acc2 + jnp.dot(shifted, w2_ref[i],
                              preferred_element_type=jnp.float32)
    y2 = jnp.maximum(acc2 + b2_ref[...], 0.0)                 # (8, 128)

    # ---- Simple_Layer (FC); torch NCHW-flatten order folded into wfc_ref ----
    acc = bfc_ref[...]                                        # (1, num_classes)
    for h in range(wfc_ref.shape[0]):
        acc = acc + jnp.dot(y2[h:h + 1, :], wfc_ref[h],
                            preferred_element_type=jnp.float32)
    out_ref[0] = acc


# ------------------------------- host wrapper ------------------------------ #

def _pick(nout, nin, off):
    m = np.zeros((nout, nin), np.float32)
    m[np.arange(nout), 2 * np.arange(nout) + off] = 1.0
    return m


def convnet_forward(x_nchw, params):
    """Mirrors ConvNet.forward (returns only the output tensor; indices_list is
    empty for this struct_param since MaxPool2d has return_indices=False)."""
    N, Cin, H, W = x_nchw.shape
    w1, b1 = params["w1"], params["b1"]          # (C1, Cin, 3, 3), (C1,)
    w2, b2 = params["w2"], params["b2"]          # (C2, C1, 3, 3), (C2,)
    wfc, bfc = params["w_fc"], params["b_fc"]    # (C2*PH*PW, K),  (K,)
    C1, _, KH, KW = w1.shape
    C2 = w2.shape[0]
    PH, PW = H // 2, W // 2
    NCLS = wfc.shape[1]
    assert (Cin, H, W, C1, C2) == (4, 16, 16, 8, 16) and (KH, KW) == (3, 3)

    # ---- host-side packing (touches inputs/params only; no intermediates) ----
    # Padded input in row-folded NHWC layout: xp[n, hp, wp*Cin + ci]
    x_nhwc = jnp.transpose(x_nchw, (0, 2, 3, 1))
    xpad = jnp.pad(x_nhwc, ((0, 0), (1, 1), (1, 1), (0, 0)))
    xp = xpad.reshape(N, H + 2, (W + 2) * Cin)                       # (N, 18, 72)

    # conv1 as banded matrices over the padded folded column space:
    #   w1big[i, wp*Cin+ci, w*C1+co] = w1[co, ci, i, wp-w]  for 0 <= wp-w < KW
    a1 = [jnp.asarray(np.eye(W + 2, W, k=-j, dtype=np.float32)) for j in range(KW)]
    w1big = jnp.stack([
        sum(jnp.kron(a1[j], w1[:, :, i, j].T) for j in range(KW))
        for i in range(KH)])                                         # (3, 72, 128)
    b1row = jnp.tile(b1, W).reshape(1, W * C1)                       # (1, 128)

    # conv2: banded over the UNPADDED pooled columns (w-padding folded by
    # clipping the band); h-padding handled by the shift matrices rsh.
    a2 = [jnp.asarray(np.eye(PW, PW, k=1 - j, dtype=np.float32)) for j in range(KW)]
    w2big = jnp.stack([
        sum(jnp.kron(a2[j], w2[:, :, i, j].T) for j in range(KW))
        for i in range(KH)])                                         # (3, 64, 128)
    b2row = jnp.tile(b2, PW).reshape(1, PW * C2)                     # (1, 128)
    rsh = jnp.asarray(np.stack(
        [np.eye(PH, PH, k=i - 1) for i in range(KH)]).astype(np.float32))  # (3,8,8)

    # 2x2 max-pool selection matrices (row pairs on the left, col pairs right).
    rpe = jnp.asarray(_pick(PH, H, 0))                               # (8, 16)
    rpo = jnp.asarray(_pick(PH, H, 1))
    cpe = jnp.asarray(np.kron(_pick(PW, W, 0).T,
                              np.eye(C1, dtype=np.float32)))         # (128, 64)
    cpo = jnp.asarray(np.kron(_pick(PW, W, 1).T,
                              np.eye(C1, dtype=np.float32)))

    # FC weight rearranged so y2's [h, w*C2+c] layout contracts directly in
    # torch's NCHW flatten order (c*PH*PW + h*PW + w).
    wfcbig = jnp.transpose(wfc.reshape(C2, PH, PW, NCLS),
                           (1, 2, 0, 3)).reshape(PH, PW * C2, NCLS)  # (8, 128, 10)
    bfc2 = bfc.reshape(1, NCLS)

    out = pl.pallas_call(
        _fused_convnet_kernel,
        out_shape=jax.ShapeDtypeStruct((N, 1, NCLS), jnp.float32),
        grid=(N,),
        in_specs=[
            pl.BlockSpec((1, H + 2, (W + 2) * Cin), lambda n: (n, 0, 0)),  # xp
            pl.BlockSpec(w1big.shape, lambda n: (0, 0, 0)),
            pl.BlockSpec(b1row.shape, lambda n: (0, 0)),
            pl.BlockSpec(rpe.shape, lambda n: (0, 0)),
            pl.BlockSpec(rpo.shape, lambda n: (0, 0)),
            pl.BlockSpec(cpe.shape, lambda n: (0, 0)),
            pl.BlockSpec(cpo.shape, lambda n: (0, 0)),
            pl.BlockSpec(rsh.shape, lambda n: (0, 0, 0)),
            pl.BlockSpec(w2big.shape, lambda n: (0, 0, 0)),
            pl.BlockSpec(b2row.shape, lambda n: (0, 0)),
            pl.BlockSpec(wfcbig.shape, lambda n: (0, 0, 0)),
            pl.BlockSpec(bfc2.shape, lambda n: (0, 0)),
        ],
        out_specs=pl.BlockSpec((1, 1, NCLS), lambda n: (n, 0, 0)),
        compiler_params=pltpu.CompilerParams(
            dimension_semantics=("parallel",)),
    )(xp, w1big, b1row, rpe, rpo, cpe, cpo, rsh, w2big, b2row, wfcbig, bfc2)

    return out.reshape(N, NCLS)


# -------------------------- reference / params ----------------------------- #

def _reference_forward(x_nchw, params):
    """Pure-JAX reference (torch semantics) for correctness checking."""
    dn = ("NCHW", "OIHW", "NCHW")
    y = lax.conv_general_dilated(x_nchw, params["w1"], (1, 1),
                                 ((1, 1), (1, 1)), dimension_numbers=dn)
    y = jnp.maximum(y + params["b1"][None, :, None, None], 0.0)
    y = lax.reduce_window(y, -jnp.inf, lax.max,
                          (1, 1, 2, 2), (1, 1, 2, 2), "VALID")
    y = lax.conv_general_dilated(y, params["w2"], (1, 1),
                                 ((1, 1), (1, 1)), dimension_numbers=dn)
    y = jnp.maximum(y + params["b2"][None, :, None, None], 0.0)
    flat = y.reshape(y.shape[0], -1)                 # torch NCHW flatten order
    return flat @ params["w_fc"] + params["b_fc"]


def init_params(key):
    k1, k2, k3, k4, k5, k6 = jax.random.split(key, 6)
    return {
        "w1": 0.1 * jax.random.normal(k1, (8, 4, 3, 3), jnp.float32),
        "b1": 0.1 * jax.random.normal(k2, (8,), jnp.float32),
        "w2": 0.1 * jax.random.normal(k3, (16, 8, 3, 3), jnp.float32),
        "b2": 0.1 * jax.random.normal(k4, (16,), jnp.float32),
        "w_fc": 0.05 * jax.random.normal(k5, (16 * 8 * 8, 10), jnp.float32),
        "b_fc": 0.05 * jax.random.normal(k6, (10,), jnp.float32),
    }


if __name__ == "__main__":
    key = jax.random.PRNGKey(0)
    kx, kp = jax.random.split(key)
    x = jax.random.normal(kx, (2, 4, 16, 16), jnp.float32)   # NCHW input
    params = init_params(kp)

    fwd = jax.jit(convnet_forward)
    out = fwd(x, params)
    jax.block_until_ready(out)
    assert out.shape == (2, 10) and out.dtype == jnp.float32

    ref = jax.jit(_reference_forward)(x, params)
    jax.block_until_ready(ref)
    max_err = float(jnp.max(jnp.abs(out - ref)))
    assert max_err < 1e-3, f"mismatch vs reference: {max_err}"

    print("KERNEL_OK")
</pallas_src>

<mosaic_0001>
module attributes {stable_mosaic.version = 11 : i64} {
  func.func @_fused_convnet_kernel(%arg0: i32, %arg1: memref<1x18x72xf32, #tpu.memory_space<vmem>>, %arg2: memref<3x72x128xf32, #tpu.memory_space<vmem>>, %arg3: memref<1x128xf32, #tpu.memory_space<vmem>>, %arg4: memref<8x16xf32, #tpu.memory_space<vmem>>, %arg5: memref<8x16xf32, #tpu.memory_space<vmem>>, %arg6: memref<128x64xf32, #tpu.memory_space<vmem>>, %arg7: memref<128x64xf32, #tpu.memory_space<vmem>>, %arg8: memref<3x8x8xf32, #tpu.memory_space<vmem>>, %arg9: memref<3x64x128xf32, #tpu.memory_space<vmem>>, %arg10: memref<1x128xf32, #tpu.memory_space<vmem>>, %arg11: memref<8x128x10xf32, #tpu.memory_space<vmem>>, %arg12: memref<1x10xf32, #tpu.memory_space<vmem>>, %arg13: memref<1x1x10xf32, #tpu.memory_space<vmem>>) attributes {dimension_semantics = [#tpu.dimension_semantics<parallel>], iteration_bounds = array<i64: 2>, scalar_prefetch = 0 : i64, scratch_operands = 0 : i64, tpu.core_type = #tpu.core_type<tc>, window_params = [{transform_indices = @transform_0, window_bounds = array<i64: 1, 18, 72>}, {pipeline_mode = #tpu.pipeline_mode<synchronous>, transform_indices = @transform_1, window_bounds = array<i64: 3, 72, 128>}, {pipeline_mode = #tpu.pipeline_mode<synchronous>, transform_indices = @transform_2, window_bounds = array<i64: 1, 128>}, {pipeline_mode = #tpu.pipeline_mode<synchronous>, transform_indices = @transform_3, window_bounds = array<i64: 8, 16>}, {pipeline_mode = #tpu.pipeline_mode<synchronous>, transform_indices = @transform_4, window_bounds = array<i64: 8, 16>}, {pipeline_mode = #tpu.pipeline_mode<synchronous>, transform_indices = @transform_5, window_bounds = array<i64: 128, 64>}, {pipeline_mode = #tpu.pipeline_mode<synchronous>, transform_indices = @transform_6, window_bounds = array<i64: 128, 64>}, {pipeline_mode = #tpu.pipeline_mode<synchronous>, transform_indices = @transform_7, window_bounds = array<i64: 3, 8, 8>}, {pipeline_mode = #tpu.pipeline_mode<synchronous>, transform_indices = @transform_8, window_bounds = array<i64: 3, 64, 128>}, {pipeline_mode = #tpu.pipeline_mode<synchronous>, transform_indices = @transform_9, window_bounds = array<i64: 1, 128>}, {pipeline_mode = #tpu.pipeline_mode<synchronous>, transform_indices = @transform_10, window_bounds = array<i64: 8, 128, 10>}, {pipeline_mode = #tpu.pipeline_mode<synchronous>, transform_indices = @transform_11, window_bounds = array<i64: 1, 10>}, {transform_indices = @transform_12, window_bounds = array<i64: 1, 1, 10>}]} {
    %c0 = arith.constant 0 : index
    %c0_0 = arith.constant 0 : index
    %c0_1 = arith.constant 0 : index
    %0 = vector.load %arg1[%c0, %c0_0, %c0_1] : memref<1x18x72xf32, #tpu.memory_space<vmem>>, vector<1x18x72xf32>
    %1 = vector.shape_cast %0 : vector<1x18x72xf32> to vector<18x72xf32>
    %cst = arith.constant 0.000000e+00 : f32
    %2 = vector.broadcast %cst : f32 to vector<16x128xf32>
    %3 = vector.extract_strided_slice %1 {offsets = [0, 0], sizes = [16, 72], strides = [1, 1]} : vector<18x72xf32> to vector<16x72xf32>
    %c0_2 = arith.constant 0 : index
    %c0_3 = arith.constant 0 : index
    %c0_4 = arith.constant 0 : index
    %4 = vector.load %arg2[%c0_2, %c0_3, %c0_4] : memref<3x72x128xf32, #tpu.memory_space<vmem>>, vector<1x72x128xf32>
    %5 = vector.shape_cast %4 : vector<1x72x128xf32> to vector<72x128xf32>
    %cst_5 = arith.constant dense<0.000000e+00> : vector<16x128xf32>
    %6 = tpu.matmul %3, %5, %cst_5 {dimension_numbers = #tpu.dot_dimension_numbers<[1], [0], [0], [1], [0, 0, 1, 1], [], []>} : vector<16x72xf32>, vector<72x128xf32>, vector<16x128xf32> -> vector<16x128xf32>
    %7 = arith.addf %2, %6 : vector<16x128xf32>
    %8 = vector.extract_strided_slice %1 {offsets = [1, 0], sizes = [16, 72], strides = [1, 1]} : vector<18x72xf32> to vector<16x72xf32>
    %c1 = arith.constant 1 : index
    %c0_6 = arith.constant 0 : index
    %c0_7 = arith.constant 0 : index
    %9 = vector.load %arg2[%c1, %c0_6, %c0_7] : memref<3x72x128xf32, #tpu.memory_space<vmem>>, vector<1x72x128xf32>
    %10 = vector.shape_cast %9 : vector<1x72x128xf32> to vector<72x128xf32>
    %cst_8 = arith.constant dense<0.000000e+00> : vector<16x128xf32>
    %11 = tpu.matmul %8, %10, %cst_8 {dimension_numbers = #tpu.dot_dimension_numbers<[1], [0], [0], [1], [0, 0, 1, 1], [], []>} : vector<16x72xf32>, vector<72x128xf32>, vector<16x128xf32> -> vector<16x128xf32>
    %12 = arith.addf %7, %11 : vector<16x128xf32>
    %13 = vector.extract_strided_slice %1 {offsets = [2, 0], sizes = [16, 72], strides = [1, 1]} : vector<18x72xf32> to vector<16x72xf32>
    %c2 = arith.constant 2 : index
    %c0_9 = arith.constant 0 : index
    %c0_10 = arith.constant 0 : index
    %14 = vector.load %arg2[%c2, %c0_9, %c0_10] : memref<3x72x128xf32, #tpu.memory_space<vmem>>, vector<1x72x128xf32>
    %15 = vector.shape_cast %14 : vector<1x72x128xf32> to vector<72x128xf32>
    %cst_11 = arith.constant dense<0.000000e+00> : vector<16x128xf32>
    %16 = tpu.matmul %13, %15, %cst_11 {dimension_numbers = #tpu.dot_dimension_numbers<[1], [0], [0], [1], [0, 0, 1, 1], [], []>} : vector<16x72xf32>, vector<72x128xf32>, vector<16x128xf32> -> vector<16x128xf32>
    %17 = arith.addf %12, %16 : vector<16x128xf32>
    %c0_12 = arith.constant 0 : index
    %c0_13 = arith.constant 0 : index
    %18 = vector.load %arg3[%c0_12, %c0_13] : memref<1x128xf32, #tpu.memory_space<vmem>>, vector<1x128xf32>
    %19 = vector.broadcast %18 : vector<1x128xf32> to vector<16x128xf32>
    %20 = arith.addf %17, %19 : vector<16x128xf32>
    %cst_14 = arith.constant 0.000000e+00 : f32
    %21 = vector.broadcast %cst_14 : f32 to vector<16x128xf32>
    %22 = arith.maximumf %20, %21 : vector<16x128xf32>
    %c0_15 = arith.constant 0 : index
    %c0_16 = arith.constant 0 : index
    %23 = vector.load %arg4[%c0_15, %c0_16] : memref<8x16xf32, #tpu.memory_space<vmem>>, vector<8x16xf32>
    %cst_17 = arith.constant dense<0.000000e+00> : vector<8x128xf32>
    %24 = tpu.matmul %23, %22, %cst_17 {dimension_numbers = #tpu.dot_dimension_numbers<[1], [0], [0], [1], [0, 0, 1, 1], [], []>} : vector<8x16xf32>, vector<16x128xf32>, vector<8x128xf32> -> vector<8x128xf32>
    %c0_18 = arith.constant 0 : index
    %c0_19 = arith.constant 0 : index
    %25 = vector.load %arg5[%c0_18, %c0_19] : memref<8x16xf32, #tpu.memory_space<vmem>>, vector<8x16xf32>
    %cst_20 = arith.constant dense<0.000000e+00> : vector<8x128xf32>
    %26 = tpu.matmul %25, %22, %cst_20 {dimension_numbers = #tpu.dot_dimension_numbers<[1], [0], [0], [1], [0, 0, 1, 1], [], []>} : vector<8x16xf32>, vector<16x128xf32>, vector<8x128xf32> -> vector<8x128xf32>
    %27 = arith.maximumf %24, %26 : vector<8x128xf32>
    %c0_21 = arith.constant 0 : index
    %c0_22 = arith.constant 0 : index
    %28 = vector.load %arg6[%c0_21, %c0_22] : memref<128x64xf32, #tpu.memory_space<vmem>>, vector<128x64xf32>
    %cst_23 = arith.constant dense<0.000000e+00> : vector<8x64xf32>
    %29 = tpu.matmul %27, %28, %cst_23 {dimension_numbers = #tpu.dot_dimension_numbers<[1], [0], [0], [1], [0, 0, 1, 1], [], []>} : vector<8x128xf32>, vector<128x64xf32>, vector<8x64xf32> -> vector<8x64xf32>
    %c0_24 = arith.constant 0 : index
    %c0_25 = arith.constant 0 : index
    %30 = vector.load %arg7[%c0_24, %c0_25] : memref<128x64xf32, #tpu.memory_space<vmem>>, vector<128x64xf32>
    %cst_26 = arith.constant dense<0.000000e+00> : vector<8x64xf32>
    %31 = tpu.matmul %27, %30, %cst_26 {dimension_numbers = #tpu.dot_dimension_numbers<[1], [0], [0], [1], [0, 0, 1, 1], [], []>} : vector<8x128xf32>, vector<128x64xf32>, vector<8x64xf32> -> vector<8x64xf32>
    %32 = arith.maximumf %29, %31 : vector<8x64xf32>
    %cst_27 = arith.constant 0.000000e+00 : f32
    %33 = vector.broadcast %cst_27 : f32 to vector<8x128xf32>
    %c0_28 = arith.constant 0 : index
    %c0_29 = arith.constant 0 : index
    %c0_30 = arith.constant 0 : index
    %34 = vector.load %arg8[%c0_28, %c0_29, %c0_30] : memref<3x8x8xf32, #tpu.memory_space<vmem>>, vector<1x8x8xf32>
    %35 = vector.shape_cast %34 : vector<1x8x8xf32> to vector<8x8xf32>
    %cst_31 = arith.constant dense<0.000000e+00> : vector<8x64xf32>
    %36 = tpu.matmul %35, %32, %cst_31 {dimension_numbers = #tpu.dot_dimension_numbers<[1], [0], [0], [1], [0, 0, 1, 1], [], []>} : vector<8x8xf32>, vector<8x64xf32>, vector<8x64xf32> -> vector<8x64xf32>
    %c0_32 = arith.constant 0 : index
    %c0_33 = arith.constant 0 : index
    %c0_34 = arith.constant 0 : index
    %37 = vector.load %arg9[%c0_32, %c0_33, %c0_34] : memref<3x64x128xf32, #tpu.memory_space<vmem>>, vector<1x64x128xf32>
    %38 = vector.shape_cast %37 : vector<1x64x128xf32> to vector<64x128xf32>
    %cst_35 = arith.constant dense<0.000000e+00> : vector<8x128xf32>
    %39 = tpu.matmul %36, %38, %cst_35 {dimension_numbers = #tpu.dot_dimension_numbers<[1], [0], [0], [1], [0, 0, 1, 1], [], []>} : vector<8x64xf32>, vector<64x128xf32>, vector<8x128xf32> -> vector<8x128xf32>
    %40 = arith.addf %33, %39 : vector<8x128xf32>
    %c1_36 = arith.constant 1 : index
    %c0_37 = arith.constant 0 : index
    %c0_38 = arith.constant 0 : index
    %41 = vector.load %arg8[%c1_36, %c0_37, %c0_38] : memref<3x8x8xf32, #tpu.memory_space<vmem>>, vector<1x8x8xf32>
    %42 = vector.shape_cast %41 : vector<1x8x8xf32> to vector<8x8xf32>
    %cst_39 = arith.constant dense<0.000000e+00> : vector<8x64xf32>
    %43 = tpu.matmul %42, %32, %cst_39 {dimension_numbers = #tpu.dot_dimension_numbers<[1], [0], [0], [1], [0, 0, 1, 1], [], []>} : vector<8x8xf32>, vector<8x64xf32>, vector<8x64xf32> -> vector<8x64xf32>
    %c1_40 = arith.constant 1 : index
    %c0_41 = arith.constant 0 : index
    %c0_42 = arith.constant 0 : index
    %44 = vector.load %arg9[%c1_40, %c0_41, %c0_42] : memref<3x64x128xf32, #tpu.memory_space<vmem>>, vector<1x64x128xf32>
    %45 = vector.shape_cast %44 : vector<1x64x128xf32> to vector<64x128xf32>
    %cst_43 = arith.constant dense<0.000000e+00> : vector<8x128xf32>
    %46 = tpu.matmul %43, %45, %cst_43 {dimension_numbers = #tpu.dot_dimension_numbers<[1], [0], [0], [1], [0, 0, 1, 1], [], []>} : vector<8x64xf32>, vector<64x128xf32>, vector<8x128xf32> -> vector<8x128xf32>
    %47 = arith.addf %40, %46 : vector<8x128xf32>
    %c2_44 = arith.constant 2 : index
    %c0_45 = arith.constant 0 : index
    %c0_46 = arith.constant 0 : index
    %48 = vector.load %arg8[%c2_44, %c0_45, %c0_46] : memref<3x8x8xf32, #tpu.memory_space<vmem>>, vector<1x8x8xf32>
    %49 = vector.shape_cast %48 : vector<1x8x8xf32> to vector<8x8xf32>
    %cst_47 = arith.constant dense<0.000000e+00> : vector<8x64xf32>
    %50 = tpu.matmul %49, %32, %cst_47 {dimension_numbers = #tpu.dot_dimension_numbers<[1], [0], [0], [1], [0, 0, 1, 1], [], []>} : vector<8x8xf32>, vector<8x64xf32>, vector<8x64xf32> -> vector<8x64xf32>
    %c2_48 = arith.constant 2 : index
    %c0_49 = arith.constant 0 : index
    %c0_50 = arith.constant 0 : index
    %51 = vector.load %arg9[%c2_48, %c0_49, %c0_50] : memref<3x64x128xf32, #tpu.memory_space<vmem>>, vector<1x64x128xf32>
    %52 = vector.shape_cast %51 : vector<1x64x128xf32> to vector<64x128xf32>
    %cst_51 = arith.constant dense<0.000000e+00> : vector<8x128xf32>
    %53 = tpu.matmul %50, %52, %cst_51 {dimension_numbers = #tpu.dot_dimension_numbers<[1], [0], [0], [1], [0, 0, 1, 1], [], []>} : vector<8x64xf32>, vector<64x128xf32>, vector<8x128xf32> -> vector<8x128xf32>
    %54 = arith.addf %47, %53 : vector<8x128xf32>
    %c0_52 = arith.constant 0 : index
    %c0_53 = arith.constant 0 : index
    %55 = vector.load %arg10[%c0_52, %c0_53] : memref<1x128xf32, #tpu.memory_space<vmem>>, vector<1x128xf32>
    %56 = vector.broadcast %55 : vector<1x128xf32> to vector<8x128xf32>
    %57 = arith.addf %54, %56 : vector<8x128xf32>
    %cst_54 = arith.constant 0.000000e+00 : f32
    %58 = vector.broadcast %cst_54 : f32 to vector<8x128xf32>
    %59 = arith.maximumf %57, %58 : vector<8x128xf32>
    %c0_55 = arith.constant 0 : index
    %c0_56 = arith.constant 0 : index
    %60 = vector.load %arg12[%c0_55, %c0_56] : memref<1x10xf32, #tpu.memory_space<vmem>>, vector<1x10xf32>
    %61 = vector.extract_strided_slice %59 {offsets = [0, 0], sizes = [1, 128], strides = [1, 1]} : vector<8x128xf32> to vector<1x128xf32>
    %c0_57 = arith.constant 0 : index
    %c0_58 = arith.constant 0 : index
    %c0_59 = arith.constant 0 : index
    %62 = vector.load %arg11[%c0_57, %c0_58, %c0_59] : memref<8x128x10xf32, #tpu.memory_space<vmem>>, vector<1x128x10xf32>
    %63 = vector.shape_cast %62 : vector<1x128x10xf32> to vector<128x10xf32>
    %cst_60 = arith.constant dense<0.000000e+00> : vector<1x10xf32>
    %64 = tpu.matmul %61, %63, %cst_60 {dimension_numbers = #tpu.dot_dimension_numbers<[1], [0], [0], [1], [0, 0, 1, 1], [], []>} : vector<1x128xf32>, vector<128x10xf32>, vector<1x10xf32> -> vector<1x10xf32>
    %65 = arith.addf %60, %64 : vector<1x10xf32>
    %66 = vector.extract_strided_slice %59 {offsets = [1, 0], sizes = [1, 128], strides = [1, 1]} : vector<8x128xf32> to vector<1x128xf32>
    %c1_61 = arith.constant 1 : index
    %c0_62 = arith.constant 0 : index
    %c0_63 = arith.constant 0 : index
    %67 = vector.load %arg11[%c1_61, %c0_62, %c0_63] : memref<8x128x10xf32, #tpu.memory_space<vmem>>, vector<1x128x10xf32>
    %68 = vector.shape_cast %67 : vector<1x128x10xf32> to vector<128x10xf32>
    %cst_64 = arith.constant dense<0.000000e+00> : vector<1x10xf32>
    %69 = tpu.matmul %66, %68, %cst_64 {dimension_numbers = #tpu.dot_dimension_numbers<[1], [0], [0], [1], [0, 0, 1, 1], [], []>} : vector<1x128xf32>, vector<128x10xf32>, vector<1x10xf32> -> vector<1x10xf32>
    %70 = arith.addf %65, %69 : vector<1x10xf32>
    %71 = vector.extract_strided_slice %59 {offsets = [2, 0], sizes = [1, 128], strides = [1, 1]} : vector<8x128xf32> to vector<1x128xf32>
    %c2_65 = arith.constant 2 : index
    %c0_66 = arith.constant 0 : index
    %c0_67 = arith.constant 0 : index
    %72 = vector.load %arg11[%c2_65, %c0_66, %c0_67] : memref<8x128x10xf32, #tpu.memory_space<vmem>>, vector<1x128x10xf32>
    %73 = vector.shape_cast %72 : vector<1x128x10xf32> to vector<128x10xf32>
    %cst_68 = arith.constant dense<0.000000e+00> : vector<1x10xf32>
    %74 = tpu.matmul %71, %73, %cst_68 {dimension_numbers = #tpu.dot_dimension_numbers<[1], [0], [0], [1], [0, 0, 1, 1], [], []>} : vector<1x128xf32>, vector<128x10xf32>, vector<1x10xf32> -> vector<1x10xf32>
    %75 = arith.addf %70, %74 : vector<1x10xf32>
    %76 = vector.extract_strided_slice %59 {offsets = [3, 0], sizes = [1, 128], strides = [1, 1]} : vector<8x128xf32> to vector<1x128xf32>
    %c3 = arith.constant 3 : index
    %c0_69 = arith.constant 0 : index
    %c0_70 = arith.constant 0 : index
    %77 = vector.load %arg11[%c3, %c0_69, %c0_70] : memref<8x128x10xf32, #tpu.memory_space<vmem>>, vector<1x128x10xf32>
    %78 = vector.shape_cast %77 : vector<1x128x10xf32> to vector<128x10xf32>
    %cst_71 = arith.constant dense<0.000000e+00> : vector<1x10xf32>
    %79 = tpu.matmul %76, %78, %cst_71 {dimension_numbers = #tpu.dot_dimension_numbers<[1], [0], [0], [1], [0, 0, 1, 1], [], []>} : vector<1x128xf32>, vector<128x10xf32>, vector<1x10xf32> -> vector<1x10xf32>
    %80 = arith.addf %75, %79 : vector<1x10xf32>
    %81 = vector.extract_strided_slice %59 {offsets = [4, 0], sizes = [1, 128], strides = [1, 1]} : vector<8x128xf32> to vector<1x128xf32>
    %c4 = arith.constant 4 : index
    %c0_72 = arith.constant 0 : index
    %c0_73 = arith.constant 0 : index
    %82 = vector.load %arg11[%c4, %c0_72, %c0_73] : memref<8x128x10xf32, #tpu.memory_space<vmem>>, vector<1x128x10xf32>
    %83 = vector.shape_cast %82 : vector<1x128x10xf32> to vector<128x10xf32>
    %cst_74 = arith.constant dense<0.000000e+00> : vector<1x10xf32>
    %84 = tpu.matmul %81, %83, %cst_74 {dimension_numbers = #tpu.dot_dimension_numbers<[1], [0], [0], [1], [0, 0, 1, 1], [], []>} : vector<1x128xf32>, vector<128x10xf32>, vector<1x10xf32> -> vector<1x10xf32>
    %85 = arith.addf %80, %84 : vector<1x10xf32>
    %86 = vector.extract_strided_slice %59 {offsets = [5, 0], sizes = [1, 128], strides = [1, 1]} : vector<8x128xf32> to vector<1x128xf32>
    %c5 = arith.constant 5 : index
    %c0_75 = arith.constant 0 : index
    %c0_76 = arith.constant 0 : index
    %87 = vector.load %arg11[%c5, %c0_75, %c0_76] : memref<8x128x10xf32, #tpu.memory_space<vmem>>, vector<1x128x10xf32>
    %88 = vector.shape_cast %87 : vector<1x128x10xf32> to vector<128x10xf32>
    %cst_77 = arith.constant dense<0.000000e+00> : vector<1x10xf32>
    %89 = tpu.matmul %86, %88, %cst_77 {dimension_numbers = #tpu.dot_dimension_numbers<[1], [0], [0], [1], [0, 0, 1, 1], [], []>} : vector<1x128xf32>, vector<128x10xf32>, vector<1x10xf32> -> vector<1x10xf32>
    %90 = arith.addf %85, %89 : vector<1x10xf32>
    %91 = vector.extract_strided_slice %59 {offsets = [6, 0], sizes = [1, 128], strides = [1, 1]} : vector<8x128xf32> to vector<1x128xf32>
    %c6 = arith.constant 6 : index
    %c0_78 = arith.constant 0 : index
    %c0_79 = arith.constant 0 : index
    %92 = vector.load %arg11[%c6, %c0_78, %c0_79] : memref<8x128x10xf32, #tpu.memory_space<vmem>>, vector<1x128x10xf32>
    %93 = vector.shape_cast %92 : vector<1x128x10xf32> to vector<128x10xf32>
    %cst_80 = arith.constant dense<0.000000e+00> : vector<1x10xf32>
    %94 = tpu.matmul %91, %93, %cst_80 {dimension_numbers = #tpu.dot_dimension_numbers<[1], [0], [0], [1], [0, 0, 1, 1], [], []>} : vector<1x128xf32>, vector<128x10xf32>, vector<1x10xf32> -> vector<1x10xf32>
    %95 = arith.addf %90, %94 : vector<1x10xf32>
    %96 = vector.extract_strided_slice %59 {offsets = [7, 0], sizes = [1, 128], strides = [1, 1]} : vector<8x128xf32> to vector<1x128xf32>
    %c7 = arith.constant 7 : index
    %c0_81 = arith.constant 0 : index
    %c0_82 = arith.constant 0 : index
    %97 = vector.load %arg11[%c7, %c0_81, %c0_82] : memref<8x128x10xf32, #tpu.memory_space<vmem>>, vector<1x128x10xf32>
    %98 = vector.shape_cast %97 : vector<1x128x10xf32> to vector<128x10xf32>
    %cst_83 = arith.constant dense<0.000000e+00> : vector<1x10xf32>
    %99 = tpu.matmul %96, %98, %cst_83 {dimension_numbers = #tpu.dot_dimension_numbers<[1], [0], [0], [1], [0, 0, 1, 1], [], []>} : vector<1x128xf32>, vector<128x10xf32>, vector<1x10xf32> -> vector<1x10xf32>
    %100 = arith.addf %95, %99 : vector<1x10xf32>
    %c0_84 = arith.constant 0 : index
    %c0_85 = arith.constant 0 : index
    %c0_86 = arith.constant 0 : index
    %101 = vector.load %arg13[%c0_84, %c0_85, %c0_86] : memref<1x1x10xf32, #tpu.memory_space<vmem>>, vector<1x1x10xf32>
    %102 = vector.shape_cast %101 : vector<1x1x10xf32> to vector<1x10xf32>
    %103 = vector.shape_cast %100 : vector<1x10xf32> to vector<1x1x10xf32>
    tpu.vector_store %arg13[%c0_84, %c0_85, %c0_86], %103 {strides = array<i32>} : memref<1x1x10xf32, #tpu.memory_space<vmem>>, vector<1x1x10xf32>,
    return
  }
  func.func @transform_0(%arg0: i32) -> (i32, i32, i32) {
    %c0_i32 = arith.constant 0 : i32
    %c0_i32_0 = arith.constant 0 : i32
    %c0_i32_1 = arith.constant 0 : i32
    return %arg0, %c0_i32, %c0_i32_0 : i32, i32, i32
  }
  func.func @transform_1(%arg0: i32) -> (i32, i32, i32) {
    %c0_i32 = arith.constant 0 : i32
    %c0_i32_0 = arith.constant 0 : i32
    %c0_i32_1 = arith.constant 0 : i32
    %c0_i32_2 = arith.constant 0 : i32
    return %c0_i32, %c0_i32_0, %c0_i32_1 : i32, i32, i32
  }
  func.func @transform_2(%arg0: i32) -> (i32, i32) {
    %c0_i32 = arith.constant 0 : i32
    %c0_i32_0 = arith.constant 0 : i32
    %c0_i32_1 = arith.constant 0 : i32
    return %c0_i32, %c0_i32_0 : i32, i32
  }
  func.func @transform_3(%arg0: i32) -> (i32, i32) {
    %c0_i32 = arith.constant 0 : i32
    %c0_i32_0 = arith.constant 0 : i32
    %c0_i32_1 = arith.constant 0 : i32
    return %c0_i32, %c0_i32_0 : i32, i32
  }
  func.func @transform_4(%arg0: i32) -> (i32, i32) {
    %c0_i32 = arith.constant 0 : i32
    %c0_i32_0 = arith.constant 0 : i32
    %c0_i32_1 = arith.constant 0 : i32
    return %c0_i32, %c0_i32_0 : i32, i32
  }
  func.func @transform_5(%arg0: i32) -> (i32, i32) {
    %c0_i32 = arith.constant 0 : i32
    %c0_i32_0 = arith.constant 0 : i32
    %c0_i32_1 = arith.constant 0 : i32
    return %c0_i32, %c0_i32_0 : i32, i32
  }
  func.func @transform_6(%arg0: i32) -> (i32, i32) {
    %c0_i32 = arith.constant 0 : i32
    %c0_i32_0 = arith.constant 0 : i32
    %c0_i32_1 = arith.constant 0 : i32
    return %c0_i32, %c0_i32_0 : i32, i32
  }
  func.func @transform_7(%arg0: i32) -> (i32, i32, i32) {
    %c0_i32 = arith.constant 0 : i32
    %c0_i32_0 = arith.constant 0 : i32
    %c0_i32_1 = arith.constant 0 : i32
    %c0_i32_2 = arith.constant 0 : i32
    return %c0_i32, %c0_i32_0, %c0_i32_1 : i32, i32, i32
  }
  func.func @transform_8(%arg0: i32) -> (i32, i32, i32) {
    %c0_i32 = arith.constant 0 : i32
    %c0_i32_0 = arith.constant 0 : i32
    %c0_i32_1 = arith.constant 0 : i32
    %c0_i32_2 = arith.constant 0 : i32
    return %c0_i32, %c0_i32_0, %c0_i32_1 : i32, i32, i32
  }
  func.func @transform_9(%arg0: i32) -> (i32, i32) {
    %c0_i32 = arith.constant 0 : i32
    %c0_i32_0 = arith.constant 0 : i32
    %c0_i32_1 = arith.constant 0 : i32
    return %c0_i32, %c0_i32_0 : i32, i32
  }
  func.func @transform_10(%arg0: i32) -> (i32, i32, i32) {
    %c0_i32 = arith.constant 0 : i32
    %c0_i32_0 = arith.constant 0 : i32
    %c0_i32_1 = arith.constant 0 : i32
    %c0_i32_2 = arith.constant 0 : i32
    return %c0_i32, %c0_i32_0, %c0_i32_1 : i32, i32, i32
  }
  func.func @transform_11(%arg0: i32) -> (i32, i32) {
    %c0_i32 = arith.constant 0 : i32
    %c0_i32_0 = arith.constant 0 : i32
    %c0_i32_1 = arith.constant 0 : i32
    return %c0_i32, %c0_i32_0 : i32, i32
  }
  func.func @transform_12(%arg0: i32) -> (i32, i32, i32) {
    %c0_i32 = arith.constant 0 : i32
    %c0_i32_0 = arith.constant 0 : i32
    %c0_i32_1 = arith.constant 0 : i32
    return %arg0, %c0_i32, %c0_i32_0 : i32, i32, i32
  }
}

</mosaic_0001>

<llo_original>
// kernel: tile.13
$region0: #{tile.13}
  #allocation0 [shape = 's32[1]{0}', space=sflag, size = 0x4, scoped, tag = 'scoped memory for tile.13']
  %s0 = inlined_call_operand.vmem [shape: f32[8], index: 0, kind: input, shape index: {}]
  %s1 = inlined_call_operand.vmem [shape: f32[16,8], index: 1, kind: output, shape index: {}]
  // Predicated region
  $region2: #{tile.13} parent=0 // pred_check
    _
  $region3: #{tile.13} parent=0 // pred_check_branch
    %3 = sbr.rel (0) target = $region5
  $region4: #{tile.13} parent=0 // pred_region
    _
  $region5: #{tile.13} parent=0 // pred_fallthru
    _
  %v4 = vld [vmem:[%s0] ss:$0 sm:$0xff]
  %5 = vst [vmem:[%s1] sm:$0xff] %v4
  %s6 = scalar_lea.vmem %s1, 8
  %7 = vst [vmem:[%s6] sm:$0xff] %v4

// kernel: tile.14
$region0: #{tile.14}
  %s0 = inlined_call_operand.vmem [shape: f32[16,8], index: 0, kind: input, shape index: {}]
  %s1 = inlined_call_operand.vmem [shape: f32[1,128], index: 1, kind: output, shape index: {}]
  $region1: #{tile.14} parent=0
    #allocation0 [shape = 'u8[4096]{0}', space=vmem, size = 0x1000, scoped, tag = 'scoped mem for output reshape']
    %v2 = vld [vmem:[%s0] sm:$0x1]
    %vm3 = vcmask 64512
    %4 = vst.msk [vmem:[#allocation0] sm:$0x1] %vm3, %v2
    %s5 = scalar_lea.vmem %s0, 15
    %v6 = vld [vmem:[%s5] sm:$0x1]
    %7 = vrot.lane.b32.xlu0 %v6, 120
    %v8 = vpop.permute.xlu0 %7
    %vm9 = vcmask 1048512
    %10 = vst.msk [vmem:[#allocation0] sm:$0x1] %vm9, %v8
    %s11 = scalar_lea.vmem %s0, 14
    %v12 = vld [vmem:[%s11] sm:$0x1]
    %13 = vrot.lane.b32.xlu0 %v12, 112
    %v14 = vpop.permute.xlu0 %13
    %vm15 = vcmask 982912
    %16 = vst.msk [vmem:[#allocation0] sm:$0x1] %vm15, %v14
    %s17 = scalar_lea.vmem %s0, 13
    %v18 = vld [vmem:[%s17] sm:$0x1]
    %19 = vrot.lane.b32.xlu0 %v18, 104
    %v20 = vpop.permute.xlu0 %19
    %vm21 = vcmask 917312
    %22 = vst.msk [vmem:[#allocation0] sm:$0x1] %vm21, %v20
    %s23 = scalar_lea.vmem %s0, 12
    %v24 = vld [vmem:[%s23] sm:$0x1]
    %25 = vrot.lane.b32.xlu0 %v24, 96
    %v26 = vpop.permute.xlu0 %25
    %vm27 = vcmask 851712
    %28 = vst.msk [vmem:[#allocation0] sm:$0x1] %vm27, %v26
    %s29 = scalar_lea.vmem %s0, 11
    %v30 = vld [vmem:[%s29] sm:$0x1]
    %31 = vrot.lane.b32.xlu0 %v30, 88
    %v32 = vpop.permute.xlu0 %31
    %vm33 = vcmask 786112
    %34 = vst.msk [vmem:[#allocation0] sm:$0x1] %vm33, %v32
    %s35 = scalar_lea.vmem %s0, 10
    %v36 = vld [vmem:[%s35] sm:$0x1]
    %37 = vrot.lane.b32.xlu0 %v36, 80
    %v38 = vpop.permute.xlu0 %37
    %vm39 = vcmask 720512
    %40 = vst.msk [vmem:[#allocation0] sm:$0x1] %vm39, %v38
    %s41 = scalar_lea.vmem %s0, 9
    %v42 = vld [vmem:[%s41] sm:$0x1]
    %43 = vrot.lane.b32.xlu0 %v42, 72
    %v44 = vpop.permute.xlu0 %43
    %vm45 = vcmask 654912
    %46 = vst.msk [vmem:[#allocation0] sm:$0x1] %vm45, %v44
    %s47 = scalar_lea.vmem %s0, 8
    %v48 = vld [vmem:[%s47] sm:$0x1]
    %49 = vrot.lane.b32.xlu0 %v48, 64
    %v50 = vpop.permute.xlu0 %49
    %vm51 = vcmask 589312
    %52 = vst.msk [vmem:[#allocation0] sm:$0x1] %vm51, %v50
    %s53 = scalar_lea.vmem %s0, 7
    %v54 = vld [vmem:[%s53] sm:$0x1]
    %55 = vrot.lane.b32.xlu0 %v54, 56
    %v56 = vpop.permute.xlu0 %55
    %vm57 = vcmask 523712
    %58 = vst.msk [vmem:[#allocation0] sm:$0x1] %vm57, %v56
    %s59 = scalar_lea.vmem %s0, 6
    %v60 = vld [vmem:[%s59] sm:$0x1]
    %61 = vrot.lane.b32.xlu0 %v60, 48
    %v62 = vpop.permute.xlu0 %61
    %vm63 = vcmask 458112
    %64 = vst.msk [vmem:[#allocation0] sm:$0x1] %vm63, %v62
    %s65 = scalar_lea.vmem %s0, 5
    %v66 = vld [vmem:[%s65] sm:$0x1]
    %67 = vrot.lane.b32.xlu0 %v66, 40
    %v68 = vpop.permute.xlu0 %67
    %vm69 = vcmask 392512
    %70 = vst.msk [vmem:[#allocation0] sm:$0x1] %vm69, %v68
    %s71 = scalar_lea.vmem %s0, 4
    %v72 = vld [vmem:[%s71] sm:$0x1]
    %73 = vrot.lane.b32.xlu0 %v72, 32
    %v74 = vpop.permute.xlu0 %73
    %vm75 = vcmask 326912
    %76 = vst.msk [vmem:[#allocation0] sm:$0x1] %vm75, %v74
    %s77 = scalar_lea.vmem %s0, 3
    %v78 = vld [vmem:[%s77] sm:$0x1]
    %79 = vrot.lane.b32.xlu0 %v78, 24
    %v80 = vpop.permute.xlu0 %79
    %vm81 = vcmask 261312
    %82 = vst.msk [vmem:[#allocation0] sm:$0x1] %vm81, %v80
    %s83 = scalar_lea.vmem %s0, 2
    %v84 = vld [vmem:[%s83] sm:$0x1]
    %85 = vrot.lane.b32.xlu0 %v84, 16
    %v86 = vpop.permute.xlu0 %85
    %vm87 = vcmask 195712
    %88 = vst.msk [vmem:[#allocation0] sm:$0x1] %vm87, %v86
    %s89 = scalar_lea.vmem %s0, 1
    %v90 = vld [vmem:[%s89] sm:$0x1]
    %91 = vrot.lane.b32.xlu0 %v90, 8
    %v92 = vpop.permute.xlu0 %91
    %vm93 = vcmask 130112
    %94 = vst.msk [vmem:[#allocation0] sm:$0x1] %vm93, %v92
    %s96 = sshllo.u32 0, 1
    %v98 = vld [vmem:[#allocation0] sm:%s96]
    %s99 = sshllo.u32 0, 1
    %100 = vst [vmem:[%s1] sm:%s99] %v98

// kernel: tile.18
$region0: #{tile.18}
  #allocation0 [shape = 's32[1]{0}', space=sflag, size = 0x4, scoped, tag = 'scoped memory for tile.18']
  %s0 = inlined_call_operand.vmem [shape: f32[16], index: 0, kind: input, shape index: {}]
  %s1 = inlined_call_operand.vmem [shape: f32[8,16], index: 1, kind: output, shape index: {}]
  // Predicated region
  $region2: #{tile.18} parent=0 // pred_check
    _
  $region3: #{tile.18} parent=0 // pred_check_branch
    %3 = sbr.rel (0) target = $region5
  $region4: #{tile.18} parent=0 // pred_region
    _
  $region5: #{tile.18} parent=0 // pred_fallthru
    _
  %v4 = vld [vmem:[%s0] ss:$0 sm:$0xff]
  %5 = vst [vmem:[%s1] sm:$0xff] %v4

// kernel: tile.19
$region0: #{tile.19}
  %s0 = inlined_call_operand.vmem [shape: f32[8,16], index: 0, kind: input, shape index: {}]
  %s1 = inlined_call_operand.vmem [shape: f32[1,128], index: 1, kind: output, shape index: {}]
  $region1: #{tile.19} parent=0
    #allocation0 [shape = 'u8[4096]{0}', space=vmem, size = 0x1000, scoped, tag = 'scoped mem for output reshape']
    %v2 = vld [vmem:[%s0] sm:$0x1]
    %vm3 = vcmask 130048
    %4 = vst.msk [vmem:[#allocation0] sm:$0x1] %vm3, %v2
    %s5 = scalar_lea.vmem %s0, 7
    %v6 = vld [vmem:[%s5] sm:$0x1]
    %7 = vrot.lane.b32.xlu0 %v6, 112
    %v8 = vpop.permute.xlu0 %7
    %vm9 = vcmask 1048448
    %10 = vst.msk [vmem:[#allocation0] sm:$0x1] %vm9, %v8
    %s11 = scalar_lea.vmem %s0, 6
    %v12 = vld [vmem:[%s11] sm:$0x1]
    %13 = vrot.lane.b32.xlu0 %v12, 96
    %v14 = vpop.permute.xlu0 %13
    %vm15 = vcmask 917248
    %16 = vst.msk [vmem:[#allocation0] sm:$0x1] %vm15, %v14
    %s17 = scalar_lea.vmem %s0, 5
    %v18 = vld [vmem:[%s17] sm:$0x1]
    %19 = vrot.lane.b32.xlu0 %v18, 80
    %v20 = vpop.permute.xlu0 %19
    %vm21 = vcmask 786048
    %22 = vst.msk [vmem:[#allocation0] sm:$0x1] %vm21, %v20
    %s23 = scalar_lea.vmem %s0, 4
    %v24 = vld [vmem:[%s23] sm:$0x1]
    %25 = vrot.lane.b32.xlu0 %v24, 64
    %v26 = vpop.permute.xlu0 %25
    %vm27 = vcmask 654848
    %28 = vst.msk [vmem:[#allocation0] sm:$0x1] %vm27, %v26
    %s29 = scalar_lea.vmem %s0, 3
    %v30 = vld [vmem:[%s29] sm:$0x1]
    %31 = vrot.lane.b32.xlu0 %v30, 48
    %v32 = vpop.permute.xlu0 %31
    %vm33 = vcmask 523648
    %34 = vst.msk [vmem:[#allocation0] sm:$0x1] %vm33, %v32
    %s35 = scalar_lea.vmem %s0, 2
    %v36 = vld [vmem:[%s35] sm:$0x1]
    %37 = vrot.lane.b32.xlu0 %v36, 32
    %v38 = vpop.permute.xlu0 %37
    %vm39 = vcmask 392448
    %40 = vst.msk [vmem:[#allocation0] sm:$0x1] %vm39, %v38
    %s41 = scalar_lea.vmem %s0, 1
    %v42 = vld [vmem:[%s41] sm:$0x1]
    %43 = vrot.lane.b32.xlu0 %v42, 16
    %v44 = vpop.permute.xlu0 %43
    %vm45 = vcmask 261248
    %46 = vst.msk [vmem:[#allocation0] sm:$0x1] %vm45, %v44
    %s48 = sshllo.u32 0, 1
    %v50 = vld [vmem:[#allocation0] sm:%s48]
    %s51 = sshllo.u32 0, 1
    %52 = vst [vmem:[%s1] sm:%s51] %v50

// kernel: convnet_forward.1
$region0: #{convnet_forward.1}
  #allocation0 [shape = 'u32[]', space=smem, size = 0x4, offset = 0x4, fixed_abs, tag = 'smem constant byte address 0x4 - core index']
  #allocation1 [shape = 'u32[144,128]{1,0:T(1,128)}', space=vmem, size = 0x12000, scoped, tag = 'internal scratch']
  %s0 = inlined_call_operand.vmem [shape: f32[2,18,72], index: 0, kind: input, shape index: {}]
  %s1 = inlined_call_operand.vmem [shape: f32[3,72,128], index: 1, kind: input, shape index: {}]
  %s2 = inlined_call_operand.vmem [shape: f32[1,128], index: 2, kind: input, shape index: {}]
  %s3 = inlined_call_operand.vmem [shape: f32[8,16], index: 3, kind: input, shape index: {}]
  %s4 = inlined_call_operand.vmem [shape: f32[8,16], index: 4, kind: input, shape index: {}]
  %s5 = inlined_call_operand.vmem [shape: f32[128,64], index: 5, kind: input, shape index: {}]
  %s6 = inlined_call_operand.vmem [shape: f32[128,64], index: 6, kind: input, shape index: {}]
  %s7 = inlined_call_operand.vmem [shape: f32[3,8,8], index: 7, kind: input, shape index: {}]
  %s8 = inlined_call_operand.vmem [shape: f32[3,64,128], index: 8, kind: input, shape index: {}]
  %s9 = inlined_call_operand.vmem [shape: f32[1,128], index: 9, kind: input, shape index: {}]
  %s10 = inlined_call_operand.vmem [shape: f32[8,128,10], index: 10, kind: input, shape index: {}]
  %s11 = inlined_call_operand.vmem [shape: f32[1,10], index: 11, kind: input, shape index: {}]
  %s12 = inlined_call_operand.hbm [shape: f32[2,1,10], index: 12, kind: output, shape index: {}]
  %s13 = sld [smem:[#allocation0]]
  $region81: #{convnet_forward.1} parent=0
    _
  %s15 = ssub.s32 1, %s13
  %s16 = scalar_select 0, %s15, %s13
  $region1: #{convnet_forward.1} parent=0
    #allocation2 [shape = 'u8[1024]{0}', space=vmem, size = 0x400, scoped, tag = 'output window, operand 0']
    #allocation3 [shape = 's32[2]{0}', space=sflag, size = 0x8, scoped, tag = 'scoped memory for convnet_forward.1']
    %17 = vsyncpa [#allocation3], 0
    %s18 = scalar_lea.sflag [#allocation3], 1
    %19 = vsyncpa %s18, 0
    loop: start=0, step=1, limit=4
    $region2: #{convnet_forward.1} parent=1 // loop_pre_header
      _
    $region3: #{convnet_forward.1} parent=1 // loop_header
      %s21 = sphi 0, %s25
      %p22 = scmp.ge.s32.totalorder %s21, 4
      %s31 = sphi 0, %s33
      %s34 = sphi 0, %s31
      %s35 = sphi 0, %s34
      %s51 = sphi 0, %s35
      %s55 = sphi 0, %s55
      %s57 = sphi 0, %s55
      %s58 = sphi 0, %s57
      %s72 = sphi 0, %s58
      %s76 = sphi 0, %s76
      %s78 = sphi 0, %s76
      %s79 = sphi 0, %s78
      %s93 = sphi 0, %s79
      %s97 = sphi 0, %s97
      %s99 = sphi 0, %s97
      %s100 = sphi 0, %s99
      %s114 = sphi 0, %s100
      %s118 = sphi 0, %s118
      %s120 = sphi 0, %s118
      %s121 = sphi 0, %s120
      %s135 = sphi 0, %s121
      %s139 = sphi 0, %s139
      %s141 = sphi 0, %s139
      %s142 = sphi 0, %s141
      %s156 = sphi 0, %s142
      %s160 = sphi 0, %s160
      %s162 = sphi 0, %s160
      %s163 = sphi 0, %s162
      %s177 = sphi 0, %s163
      %s181 = sphi 0, %s181
      %s183 = sphi 0, %s181
      %s184 = sphi 0, %s183
      %s198 = sphi 0, %s184
      %s202 = sphi 0, %s202
      %s204 = sphi 0, %s202
      %s205 = sphi 0, %s204
      %s219 = sphi 0, %s205
      %s223 = sphi 0, %s223
      %s225 = sphi 0, %s223
      %s226 = sphi 0, %s225
      %s240 = sphi 0, %s226
      %s244 = sphi 0, %s244
      %s246 = sphi 0, %s244
      %s247 = sphi 0, %s246
      %s261 = sphi 0, %s247
      %s265 = sphi 0, %s265
      %s267 = sphi 0, %s265
      %s268 = sphi 0, %s267
      %s282 = sphi 0, %s268
      %s288 = sphi 0, %s290
      %s291 = sphi 0, %s288
      %s292 = sphi 0, %s291
      %s308 = sphi 0, %s292
    $region4: #{convnet_forward.1} parent=1 // loop_header_branch
      %24 = sbr.rel (%p22) target = $region8
    $region5: #{convnet_forward.1} parent=1 // loop_body
      %s26 = ssub.s32 %s21, 1
      %s27 = ssub.s32 %s21, 2
      %s28 = sadd.s32 %s21, 1
      %s29 = ssub.s32 %s21, %s28
      %p30 = scmp.eq.s32.totalorder %s29, 0
      %s32 = sadd.s32 %s31, 1
      %s33 = scalar_select %p30, %s31, %s32
      %p36 = pneg %p30
      %p37 = scmp.eq.s32.totalorder %s21, 1
      %p38 = por %p36, %p37
      %p39 = scmp.ne.s32.totalorder %s31, %s34
      %p40 = scmp.eq.s32.totalorder %s21, 0
      %p41 = por %p39, %p40
      %p42 = scmp.ne.s32.totalorder %s31, %s34
      %p43 = scmp.eq.s32.totalorder %s26, 1
      %p44 = por %p42, %p43
      %p45 = scmp.ne.s32.totalorder %s34, %s35
      %p46 = scmp.eq.s32.totalorder %s26, 0
      %p47 = por %p45, %p46
      %p48 = scmp.ne.s32.totalorder %s34, %s35
      %p49 = scmp.eq.s32.totalorder %s27, 1
      %p50 = por %p48, %p49
      %p52 = scmp.ne.s32.totalorder %s35, %s51
      %p53 = scmp.eq.s32.totalorder %s27, 0
      %p54 = por %p52, %p53
      %s56 = sadd.s32 %s55, 1
      %p59 = scmp.eq.s32.totalorder %s21, 1
      %p60 = scmp.ne.s32.totalorder %s55, %s57
      %p61 = scmp.eq.s32.totalorder %s21, 0
      %p62 = por %p60, %p61
      %p63 = scmp.ne.s32.totalorder %s55, %s57
      %p64 = scmp.eq.s32.totalorder %s26, 1
      %p65 = por %p63, %p64
      %p66 = scmp.ne.s32.totalorder %s57, %s58
      %p67 = scmp.eq.s32.totalorder %s26, 0
      %p68 = por %p66, %p67
      %p69 = scmp.ne.s32.totalorder %s57, %s58
      %p70 = scmp.eq.s32.totalorder %s27, 1
      %p71 = por %p69, %p70
      %p73 = scmp.ne.s32.totalorder %s58, %s72
      %p74 = scmp.eq.s32.totalorder %s27, 0
      %p75 = por %p73, %p74
      %s77 = sadd.s32 %s76, 1
      %p80 = scmp.eq.s32.totalorder %s21, 1
      %p81 = scmp.ne.s32.totalorder %s76, %s78
      %p82 = scmp.eq.s32.totalorder %s21, 0
      %p83 = por %p81, %p82
      %p84 = scmp.ne.s32.totalorder %s76, %s78
      %p85 = scmp.eq.s32.totalorder %s26, 1
      %p86 = por %p84, %p85
      %p87 = scmp.ne.s32.totalorder %s78, %s79
      %p88 = scmp.eq.s32.totalorder %s26, 0
      %p89 = por %p87, %p88
      %p90 = scmp.ne.s32.totalorder %s78, %s79
      %p91 = scmp.eq.s32.totalorder %s27, 1
      %p92 = por %p90, %p91
      %p94 = scmp.ne.s32.totalorder %s79, %s93
      %p95 = scmp.eq.s32.totalorder %s27, 0
      %p96 = por %p94, %p95
      %s98 = sadd.s32 %s97, 1
      %p101 = scmp.eq.s32.totalorder %s21, 1
      %p102 = scmp.ne.s32.totalorder %s97, %s99
      %p103 = scmp.eq.s32.totalorder %s21, 0
      %p104 = por %p102, %p103
      %p105 = scmp.ne.s32.totalorder %s97, %s99
      %p106 = scmp.eq.s32.totalorder %s26, 1
      %p107 = por %p105, %p106
      %p108 = scmp.ne.s32.totalorder %s99, %s100
      %p109 = scmp.eq.s32.totalorder %s26, 0
      %p110 = por %p108, %p109
      %p111 = scmp.ne.s32.totalorder %s99, %s100
      %p112 = scmp.eq.s32.totalorder %s27, 1
      %p113 = por %p111, %p112
      %p115 = scmp.ne.s32.totalorder %s100, %s114
      %p116 = scmp.eq.s32.totalorder %s27, 0
      %p117 = por %p115, %p116
      %s119 = sadd.s32 %s118, 1
      %p122 = scmp.eq.s32.totalorder %s21, 1
      %p123 = scmp.ne.s32.totalorder %s118, %s120
      %p124 = scmp.eq.s32.totalorder %s21, 0
      %p125 = por %p123, %p124
      %p126 = scmp.ne.s32.totalorder %s118, %s120
      %p127 = scmp.eq.s32.totalorder %s26, 1
      %p128 = por %p126, %p127
      %p129 = scmp.ne.s32.totalorder %s120, %s121
      %p130 = scmp.eq.s32.totalorder %s26, 0
      %p131 = por %p129, %p130
      %p132 = scmp.ne.s32.totalorder %s120, %s121
      %p133 = scmp.eq.s32.totalorder %s27, 1
      %p134 = por %p132, %p133
      %p136 = scmp.ne.s32.totalorder %s121, %s135
      %p137 = scmp.eq.s32.totalorder %s27, 0
      %p138 = por %p136, %p137
      %s140 = sadd.s32 %s139, 1
      %p143 = scmp.eq.s32.totalorder %s21, 1
      %p144 = scmp.ne.s32.totalorder %s139, %s141
      %p145 = scmp.eq.s32.totalorder %s21, 0
      %p146 = por %p144, %p145
      %p147 = scmp.ne.s32.totalorder %s139, %s141
      %p148 = scmp.eq.s32.totalorder %s26, 1
      %p149 = por %p147, %p148
      %p150 = scmp.ne.s32.totalorder %s141, %s142
      %p151 = scmp.eq.s32.totalorder %s26, 0
      %p152 = por %p150, %p151
      %p153 = scmp.ne.s32.totalorder %s141, %s142
      %p154 = scmp.eq.s32.totalorder %s27, 1
      %p155 = por %p153, %p154
      %p157 = scmp.ne.s32.totalorder %s142, %s156
      %p158 = scmp.eq.s32.totalorder %s27, 0
      %p159 = por %p157, %p158
      %s161 = sadd.s32 %s160, 1
      %p164 = scmp.eq.s32.totalorder %s21, 1
      %p165 = scmp.ne.s32.totalorder %s160, %s162
      %p166 = scmp.eq.s32.totalorder %s21, 0
      %p167 = por %p165, %p166
      %p168 = scmp.ne.s32.totalorder %s160, %s162
      %p169 = scmp.eq.s32.totalorder %s26, 1
      %p170 = por %p168, %p169
      %p171 = scmp.ne.s32.totalorder %s162, %s163
      %p172 = scmp.eq.s32.totalorder %s26, 0
      %p173 = por %p171, %p172
      %p174 = scmp.ne.s32.totalorder %s162, %s163
      %p175 = scmp.eq.s32.totalorder %s27, 1
      %p176 = por %p174, %p175
      %p178 = scmp.ne.s32.totalorder %s163, %s177
      %p179 = scmp.eq.s32.totalorder %s27, 0
      %p180 = por %p178, %p179
      %s182 = sadd.s32 %s181, 1
      %p185 = scmp.eq.s32.totalorder %s21, 1
      %p186 = scmp.ne.s32.totalorder %s181, %s183
      %p187 = scmp.eq.s32.totalorder %s21, 0
      %p188 = por %p186, %p187
      %p189 = scmp.ne.s32.totalorder %s181, %s183
      %p190 = scmp.eq.s32.totalorder %s26, 1
      %p191 = por %p189, %p190
      %p192 = scmp.ne.s32.totalorder %s183, %s184
      %p193 = scmp.eq.s32.totalorder %s26, 0
      %p194 = por %p192, %p193
      %p195 = scmp.ne.s32.totalorder %s183, %s184
      %p196 = scmp.eq.s32.totalorder %s27, 1
      %p197 = por %p195, %p196
      %p199 = scmp.ne.s32.totalorder %s184, %s198
      %p200 = scmp.eq.s32.totalorder %s27, 0
      %p201 = por %p199, %p200
      %s203 = sadd.s32 %s202, 1
      %p206 = scmp.eq.s32.totalorder %s21, 1
      %p207 = scmp.ne.s32.totalorder %s202, %s204
      %p208 = scmp.eq.s32.totalorder %s21, 0
      %p209 = por %p207, %p208
      %p210 = scmp.ne.s32.totalorder %s202, %s204
      %p211 = scmp.eq.s32.totalorder %s26, 1
      %p212 = por %p210, %p211
      %p213 = scmp.ne.s32.totalorder %s204, %s205
      %p214 = scmp.eq.s32.totalorder %s26, 0
      %p215 = por %p213, %p214
      %p216 = scmp.ne.s32.totalorder %s204, %s205
      %p217 = scmp.eq.s32.totalorder %s27, 1
      %p218 = por %p216, %p217
      %p220 = scmp.ne.s32.totalorder %s205, %s219
      %p221 = scmp.eq.s32.totalorder %s27, 0
      %p222 = por %p220, %p221
      %s224 = sadd.s32 %s223, 1
      %p227 = scmp.eq.s32.totalorder %s21, 1
      %p228 = scmp.ne.s32.totalorder %s223, %s225
      %p229 = scmp.eq.s32.totalorder %s21, 0
      %p230 = por %p228, %p229
      %p231 = scmp.ne.s32.totalorder %s223, %s225
      %p232 = scmp.eq.s32.totalorder %s26, 1
      %p233 = por %p231, %p232
      %p234 = scmp.ne.s32.totalorder %s225, %s226
      %p235 = scmp.eq.s32.totalorder %s26, 0
      %p236 = por %p234, %p235
      %p237 = scmp.ne.s32.totalorder %s225, %s226
      %p238 = scmp.eq.s32.totalorder %s27, 1
      %p239 = por %p237, %p238
      %p241 = scmp.ne.s32.totalorder %s226, %s240
      %p242 = scmp.eq.s32.totalorder %s27, 0
      %p243 = por %p241, %p242
      %s245 = sadd.s32 %s244, 1
      %p248 = scmp.eq.s32.totalorder %s21, 1
      %p249 = scmp.ne.s32.totalorder %s244, %s246
      %p250 = scmp.eq.s32.totalorder %s21, 0
      %p251 = por %p249, %p250
      %p252 = scmp.ne.s32.totalorder %s244, %s246
      %p253 = scmp.eq.s32.totalorder %s26, 1
      %p254 = por %p252, %p253
      %p255 = scmp.ne.s32.totalorder %s246, %s247
      %p256 = scmp.eq.s32.totalorder %s26, 0
      %p257 = por %p255, %p256
      %p258 = scmp.ne.s32.totalorder %s246, %s247
      %p259 = scmp.eq.s32.totalorder %s27, 1
      %p260 = por %p258, %p259
      %p262 = scmp.ne.s32.totalorder %s247, %s261
      %p263 = scmp.eq.s32.totalorder %s27, 0
      %p264 = por %p262, %p263
      %s266 = sadd.s32 %s265, 1
      %p269 = scmp.eq.s32.totalorder %s21, 1
      %p270 = scmp.ne.s32.totalorder %s265, %s267
      %p271 = scmp.eq.s32.totalorder %s21, 0
      %p272 = por %p270, %p271
      %p273 = scmp.ne.s32.totalorder %s265, %s267
      %p274 = scmp.eq.s32.totalorder %s26, 1
      %p275 = por %p273, %p274
      %p276 = scmp.ne.s32.totalorder %s267, %s268
      %p277 = scmp.eq.s32.totalorder %s26, 0
      %p278 = por %p276, %p277
      %p279 = scmp.ne.s32.totalorder %s267, %s268
      %p280 = scmp.eq.s32.totalorder %s27, 1
      %p281 = por %p279, %p280
      %p283 = scmp.ne.s32.totalorder %s268, %s282
      %p284 = scmp.eq.s32.totalorder %s27, 0
      %p285 = por %p283, %p284
      %s286 = ssub.s32 %s21, %s28
      %p287 = scmp.eq.s32.totalorder %s286, 0
      %s289 = sadd.s32 %s288, 1
      %s290 = scalar_select %p287, %s288, %s289
      %p293 = pneg %p287
      %p294 = scmp.eq.s32.totalorder %s21, 1
      %p295 = por %p293, %p294
      %p296 = scmp.ne.s32.totalorder %s288, %s291
      %p297 = scmp.eq.s32.totalorder %s21, 0
      %p298 = por %p296, %p297
      %p299 = scmp.ne.s32.totalorder %s288, %s291
      %p300 = scmp.eq.s32.totalorder %s26, 1
      %p301 = por %p299, %p300
      %p302 = scmp.ne.s32.totalorder %s291, %s292
      %p303 = scmp.eq.s32.totalorder %s26, 0
      %p304 = por %p302, %p303
      %p305 = scmp.ne.s32.totalorder %s291, %s292
      %p306 = scmp.eq.s32.totalorder %s27, 1
      %p307 = por %p305, %p306
      %p309 = scmp.ne.s32.totalorder %s292, %s308
      %p310 = scmp.eq.s32.totalorder %s27, 0
      %p311 = por %p309, %p310
      %p312 = scmp.le.s32.totalorder 1, %s21
      %p313 = scmp.lt.s32.totalorder %s21, 3
      %p314 = pnand %p312, %p313
      %p315 = pneg %p314
      // Predicated region
      $region9: #{convnet_forward.1} parent=5 // pred_check
        _
      $region10: #{convnet_forward.1} parent=5 // pred_check_branch
        %317 = sbr.rel (%p314) target = $region12
      $region11: #{convnet_forward.1} parent=5 // pred_region
        %s318 = ssub.s32 %s21, 1
        // Predicated region
        $region13: #{convnet_forward.1} parent=11 // pred_check
          %p319 = pneg %p68
        $region14: #{convnet_forward.1} parent=11 // pred_check_branch
          %321 = sbr.rel (%p319) target = $region16
        $region15: #{convnet_forward.1} parent=11 // pred_region
          _
        $region16: #{convnet_forward.1} parent=11 // pred_fallthru
          _
        // Predicated region
        $region17: #{convnet_forward.1} parent=11 // pred_check
          %p322 = pneg %p89
        $region18: #{convnet_forward.1} parent=11 // pred_check_branch
          %324 = sbr.rel (%p322) target = $region20
        $region19: #{convnet_forward.1} parent=11 // pred_region
          _
        $region20: #{convnet_forward.1} parent=11 // pred_fallthru
          _
        // Predicated region
        $region21: #{convnet_forward.1} parent=11 // pred_check
          %p325 = pneg %p110
        $region22: #{convnet_forward.1} parent=11 // pred_check_branch
          %327 = sbr.rel (%p325) target = $region24
        $region23: #{convnet_forward.1} parent=11 // pred_region
          _
        $region24: #{convnet_forward.1} parent=11 // pred_fallthru
          _
        // Predicated region
        $region25: #{convnet_forward.1} parent=11 // pred_check
          %p328 = pneg %p131
        $region26: #{convnet_forward.1} parent=11 // pred_check_branch
          %330 = sbr.rel (%p328) target = $region28
        $region27: #{convnet_forward.1} parent=11 // pred_region
          _
        $region28: #{convnet_forward.1} parent=11 // pred_fallthru
          _
        // Predicated region
        $region29: #{convnet_forward.1} parent=11 // pred_check
          %p331 = pneg %p152
        $region30: #{convnet_forward.1} parent=11 // pred_check_branch
          %333 = sbr.rel (%p331) target = $region32
        $region31: #{convnet_forward.1} parent=11 // pred_region
          _
        $region32: #{convnet_forward.1} parent=11 // pred_fallthru
          _
        // Predicated region
        $region33: #{convnet_forward.1} parent=11 // pred_check
          %p334 = pneg %p173
        $region34: #{convnet_forward.1} parent=11 // pred_check_branch
          %336 = sbr.rel (%p334) target = $region36
        $region35: #{convnet_forward.1} parent=11 // pred_region
          _
        $region36: #{convnet_forward.1} parent=11 // pred_fallthru
          _
        // Predicated region
        $region37: #{convnet_forward.1} parent=11 // pred_check
          %p337 = pneg %p194
        $region38: #{convnet_forward.1} parent=11 // pred_check_branch
          %339 = sbr.rel (%p337) target = $region40
        $region39: #{convnet_forward.1} parent=11 // pred_region
          _
        $region40: #{convnet_forward.1} parent=11 // pred_fallthru
          _
        // Predicated region
        $region41: #{convnet_forward.1} parent=11 // pred_check
          %p340 = pneg %p215
        $region42: #{convnet_forward.1} parent=11 // pred_check_branch
          %342 = sbr.rel (%p340) target = $region44
        $region43: #{convnet_forward.1} parent=11 // pred_region
          _
        $region44: #{convnet_forward.1} parent=11 // pred_fallthru
          _
        // Predicated region
        $region45: #{convnet_forward.1} parent=11 // pred_check
          %p343 = pneg %p236
        $region46: #{convnet_forward.1} parent=11 // pred_check_branch
          %345 = sbr.rel (%p343) target = $region48
        $region47: #{convnet_forward.1} parent=11 // pred_region
          _
        $region48: #{convnet_forward.1} parent=11 // pred_fallthru
          _
        // Predicated region
        $region49: #{convnet_forward.1} parent=11 // pred_check
          %p346 = pneg %p257
        $region50: #{convnet_forward.1} parent=11 // pred_check_branch
          %348 = sbr.rel (%p346) target = $region52
        $region51: #{convnet_forward.1} parent=11 // pred_region
          _
        $region52: #{convnet_forward.1} parent=11 // pred_fallthru
          _
        // Predicated region
        $region53: #{convnet_forward.1} parent=11 // pred_check
          %p349 = pneg %p278
        $region54: #{convnet_forward.1} parent=11 // pred_check_branch
          %351 = sbr.rel (%p349) target = $region56
        $region55: #{convnet_forward.1} parent=11 // pred_region
          _
        $region56: #{convnet_forward.1} parent=11 // pred_fallthru
          _
      $region12: #{convnet_forward.1} parent=5 // pred_fallthru
        _
      %p352 = scmp.lt.s32.totalorder %s21, 2
      // Predicated region
      $region57: #{convnet_forward.1} parent=5 // pred_check
        %p353 = pneg %p352
      $region58: #{convnet_forward.1} parent=5 // pred_check_branch
        %355 = sbr.rel (%p353) target = $region60
      $region59: #{convnet_forward.1} parent=5 // pred_region
        // Predicated region
        $region61: #{convnet_forward.1} parent=59 // pred_check
          %p356 = pneg %p41
        $region62: #{convnet_forward.1} parent=59 // pred_check_branch
          %358 = sbr.rel (%p356) target = $region64
        $region63: #{convnet_forward.1} parent=59 // pred_region
          %p359 = scmp.lt.s32.totalorder %s21, 1
          %s360 = scalar_select %p359, %s21, 1
          %s361 = smul.addr %s360, 3
          %s362 = smul.addr %s361, 8
          %s363 = scalar_lea.vmem %s0, %s362
        $region64: #{convnet_forward.1} parent=59 // pred_fallthru
          _
      $region60: #{convnet_forward.1} parent=5 // pred_fallthru
        _
      %p364 = scmp.le.s32.totalorder 1, %s21
      %p365 = scmp.lt.s32.totalorder %s21, 3
      %p366 = pnand %p364, %p365
      %p367 = pneg %p366
      // Predicated region
      $region65: #{convnet_forward.1} parent=5 // pred_check
        _
      $region66: #{convnet_forward.1} parent=5 // pred_check_branch
        %369 = sbr.rel (%p366) target = $region68
      $region67: #{convnet_forward.1} parent=5 // pred_region
        %s370 = ssub.s32 %s21, 1
        %p371 = scmp.lt.s32.totalorder %s26, 1
        %s372 = scalar_select %p371, %s26, 1
        %s373 = smul.addr %s372, 3
        %s374 = smul.addr %s373, 8
        %s375 = scalar_lea.vmem %s0, %s374
        %p376 = pneg %p47
        %p377 = pneg %p44
        %p378 = pneg %p68
        %p379 = pneg %p65
        %p380 = pneg %p89
        %p381 = pneg %p86
        %p382 = pneg %p110
        %p383 = pneg %p107
        %p384 = pneg %p131
        %p385 = pneg %p128
        %p386 = pneg %p152
        %p387 = pneg %p149
        %p388 = pneg %p173
        %p389 = pneg %p170
        %p390 = pneg %p194
        %p391 = pneg %p191
        %p392 = pneg %p215
        %p393 = pneg %p212
        %p394 = pneg %p236
        %p395 = pneg %p233
        %p396 = pneg %p257
        %p397 = pneg %p254
        %p398 = pneg %p278
        %p399 = pneg %p275
        %p400 = pneg %p304
        %p401 = pneg %p301
        %s402 = sand.u32 %s291, 1
        %s403 = scalar_lea.sflag [#allocation3], %s402
        %s404 = sand.u32 %s291, 1
        %s405 = scalar_lea.vmem [#allocation2], %s404
        %p406 = scmp.lt.s32.totalorder %s26, 1
        %s407 = scalar_select %p406, %s26, 1
        %s408 = smul.addr %s407, 3
        %s409 = smul.addr %s408, 8
        %s410 = scalar_lea.vmem %s0, %s409
        %v411 = vld [vmem:[%s410] sm:$0xff]
        %v412 = vld [vmem:[%s410 + $0x8] sm:$0xff]
        %v413 = vld [vmem:[%s410 + $0x10] sm:$0x3]
        %v414 = vld [vmem:[%s1] sm:$0xff]
        %v415 = vld [vmem:[%s1 + $0x8] sm:$0xff]
        %v416 = vld [vmem:[%s1 + $0x10] sm:$0xff]
        %v417 = vld [vmem:[%s1 + $0x18] sm:$0xff]
        %v418 = vld [vmem:[%s1 + $0x20] sm:$0xff]
        %v419 = vld [vmem:[%s1 + $0x28] sm:$0xff]
        %v420 = vld [vmem:[%s1 + $0x30] sm:$0xff]
        %v421 = vld [vmem:[%s1 + $0x38] sm:$0xff]
        %v422 = vld [vmem:[%s1 + $0x40] sm:$0xff]
        %s423 = scalar_lea.vmem %s1, 72
        %v424 = vld [vmem:[%s423] sm:$0xff]
        %v425 = vld [vmem:[%s423 + $0x8] sm:$0xff]
        %v426 = vld [vmem:[%s423 + $0x10] sm:$0xff]
        %v427 = vld [vmem:[%s423 + $0x18] sm:$0xff]
        %v428 = vld [vmem:[%s423 + $0x20] sm:$0xff]
        %v429 = vld [vmem:[%s423 + $0x28] sm:$0xff]
        %v430 = vld [vmem:[%s423 + $0x30] sm:$0xff]
        %v431 = vld [vmem:[%s423 + $0x38] sm:$0xff]
        %v432 = vld [vmem:[%s423 + $0x40] sm:$0xff]
        %vm436 = vcmask 1046528
        %v437 = vrot.slane %v411, 1
        %v438 = vrot.slane %v412, 1
        %v439 = vsel %vm436, %v437, %v438
        %v440 = vrot.slane %v413, 1
        %v441 = vsel %vm436, %v438, %v440
        %vm442 = vcmask 588800
        %v443 = vsel %vm442, %v439, 0
        %v445 = vsel %vm442, %v441, 0
        %447 = vmatprep.subr.mxu0 0.0
        %448 = vmatpush1.msra.mxu0 %v424
        %449 = vmatprep.subr.mxu0 0.0
        %450 = vmatpush1.msra.mxu0 %v425
        %451 = vmatprep.subr.mxu0 0.0
        %452 = vmatpush1.msra.mxu0 %v426
        %453 = vmatprep.subr.mxu0 0.0
        %454 = vmatpush1.msra.mxu0 %v427
        %455 = vmatprep.subr.mxu0 0.0
        %456 = vmatpush1.msra.mxu0 %v428
        %457 = vmatprep.subr.mxu0 0.0
        %458 = vmatpush1.msra.mxu0 %v429
        %459 = vmatprep.subr.mxu0 0.0
        %460 = vmatpush1.msra.mxu0 %v430
        %461 = vmatprep.subr.mxu0 0.0
        %462 = vmatpush1.msra.mxu0 %v431
        %463 = vmatprep.subr.mxu0 0.0
        %464 = vmatpush1.msra.mxu0 %v432
        %465 = vmatprep.subr.mxu0 0.0
        %466 = vmatpush1.msra.mxu0 0.0
        %467 = vmatprep.subr.mxu0 0.0
        %468 = vmatpush1.msra.mxu0 0.0
        %469 = vmatprep.subr.mxu0 0.0
        %470 = vmatpush1.msra.mxu0 0.0
        %471 = vmatprep.subr.mxu0 0.0
        %472 = vmatpush1.msra.mxu0 0.0
        %473 = vmatprep.subr.mxu0 0.0
        %474 = vmatpush1.msra.mxu0 0.0
        %475 = vmatprep.subr.mxu0 0.0
        %476 = vmatpush1.msra.mxu0 0.0
        %477 = vmatprep.subr.mxu0 0.0
        %478 = vmatpush1.msra.mxu0 0.0
        %479 = vmatprep.subr.mxu0 0.0
        %480 = vmatpush1.msra.mxu0 0.0
        %481 = vmatprep.subr.mxu0 0.0
        %482 = vmatpush1.msra.mxu0 0.0
        %483 = vmatprep.subr.mxu0 0.0
        %484 = vmatpush1.msra.mxu0 0.0
        %485 = vmatprep.subr.mxu0 0.0
        %486 = vmatpush1.msra.mxu0 0.0
        %487 = vmatprep.subr.mxu0 0.0
        %488 = vmatpush1.msra.mxu0 0.0
        %489 = vmatprep.subr.mxu0 0.0
        %490 = vmatpush1.msra.mxu0 0.0
        %491 = vmatprep.subr.mxu0 0.0
        %492 = vmatpush1.msra.mxu0 0.0
        %493 = vmatprep.subr.mxu0 0.0
        %494 = vmatpush1.msra.mxu0 0.0
        %495 = vmatprep.subr.mxu0 0.0
        %496 = vmatpush1.msra.mxu0 0.0
        %497 = vmatprep.subr.mxu0 0.0
        %498 = vmatpush1.msra.mxu0 0.0
        %499 = vmatprep.subr.mxu0 0.0
        %500 = vmatpush1.msra.mxu0 0.0
        %501 = vmatprep.subr.mxu0 0.0
        %502 = vmatpush1.msra.mxu0 0.0
        %503 = vmatprep.subr.mxu0 0.0
        %504 = vmatpush1.msra.mxu0 0.0
        %505 = vmatprep.subr.mxu0 0.0
        %506 = vmatpush1.msra.mxu0 0.0
        %507 = vmatprep.subr.mxu0 0.0
        %508 = vmatpush1.msra.mxu0 0.0
        %509 = vmatprep.subr.mxu0 0.0
        %510 = vmatpush1.msra.mxu0 0.0
        %511 = vmatprep.mubr.f32.mxu0 0.0
        %512 = vmatmul.mubr.f32.gmra.mrb[0].mxu0 %v443
        %v513 = vpop.f32.mrb[0].mxu0
        %v514 = vadd.f32 0.0, %v513
        %v515 = vpop.f32.mrb[0].mxu0
        %516 = vmatprep.mubr.f32.mxu0 0.0
        %517 = vmatmul.mubr.f32.gmra.mrb[0].mxu0 %v445
        %v518 = vpop.f32.mrb[0].mxu0
        %v519 = vadd.f32 0.0, %v518
        %v520 = vpop.f32.mrb[0].mxu0
        %521 = vdwg.mxu0
        %v522 = vsel %vm442, %v411, 0
        %v524 = vsel %vm442, %v412, 0
        %526 = vmatprep.subr.mxu0 0.0
        %527 = vmatpush1.msra.mxu0 %v414
        %528 = vmatprep.subr.mxu0 0.0
        %529 = vmatpush1.msra.mxu0 %v415
        %530 = vmatprep.subr.mxu0 0.0
        %531 = vmatpush1.msra.mxu0 %v416
        %532 = vmatprep.subr.mxu0 0.0
        %533 = vmatpush1.msra.mxu0 %v417
        %534 = vmatprep.subr.mxu0 0.0
        %535 = vmatpush1.msra.mxu0 %v418
        %536 = vmatprep.subr.mxu0 0.0
        %537 = vmatpush1.msra.mxu0 %v419
        %538 = vmatprep.subr.mxu0 0.0
        %539 = vmatpush1.msra.mxu0 %v420
        %540 = vmatprep.subr.mxu0 0.0
        %541 = vmatpush1.msra.mxu0 %v421
        %542 = vmatprep.subr.mxu0 0.0
        %543 = vmatpush1.msra.mxu0 %v422
        %544 = vmatprep.subr.mxu0 0.0
        %545 = vmatpush1.msra.mxu0 0.0
        %546 = vmatprep.subr.mxu0 0.0
        %547 = vmatpush1.msra.mxu0 0.0
        %548 = vmatprep.subr.mxu0 0.0
        %549 = vmatpush1.msra.mxu0 0.0
        %550 = vmatprep.subr.mxu0 0.0
        %551 = vmatpush1.msra.mxu0 0.0
        %552 = vmatprep.subr.mxu0 0.0
        %553 = vmatpush1.msra.mxu0 0.0
        %554 = vmatprep.subr.mxu0 0.0
        %555 = vmatpush1.msra.mxu0 0.0
        %556 = vmatprep.subr.mxu0 0.0
        %557 = vmatpush1.msra.mxu0 0.0
        %558 = vmatprep.subr.mxu0 0.0
        %559 = vmatpush1.msra.mxu0 0.0
        %560 = vmatprep.subr.mxu0 0.0
        %561 = vmatpush1.msra.mxu0 0.0
        %562 = vmatprep.subr.mxu0 0.0
        %563 = vmatpush1.msra.mxu0 0.0
        %564 = vmatprep.subr.mxu0 0.0
        %565 = vmatpush1.msra.mxu0 0.0
        %566 = vmatprep.subr.mxu0 0.0
        %567 = vmatpush1.msra.mxu0 0.0
        %568 = vmatprep.subr.mxu0 0.0
        %569 = vmatpush1.msra.mxu0 0.0
        %570 = vmatprep.subr.mxu0 0.0
        %571 = vmatpush1.msra.mxu0 0.0
        %572 = vmatprep.subr.mxu0 0.0
        %573 = vmatpush1.msra.mxu0 0.0
        %574 = vmatprep.subr.mxu0 0.0
        %575 = vmatpush1.msra.mxu0 0.0
        %576 = vmatprep.subr.mxu0 0.0
        %577 = vmatpush1.msra.mxu0 0.0
        %578 = vmatprep.subr.mxu0 0.0
        %579 = vmatpush1.msra.mxu0 0.0
        %580 = vmatprep.subr.mxu0 0.0
        %581 = vmatpush1.msra.mxu0 0.0
        %582 = vmatprep.subr.mxu0 0.0
        %583 = vmatpush1.msra.mxu0 0.0
        %584 = vmatprep.subr.mxu0 0.0
        %585 = vmatpush1.msra.mxu0 0.0
        %586 = vmatprep.subr.mxu0 0.0
        %587 = vmatpush1.msra.mxu0 0.0
        %588 = vmatprep.subr.mxu0 0.0
        %589 = vmatpush1.msra.mxu0 0.0
        %590 = vmatprep.mubr.f32.mxu0 0.0
        %591 = vmatmul.mubr.f32.gmra.mrb[0].mxu0 %v522
        %v592 = vpop.f32.mrb[0].mxu0
        %v593 = vadd.f32 %v514, %v592
        %v594 = vpop.f32.mrb[0].mxu0
        %595 = vmatprep.mubr.f32.mxu0 0.0
        %596 = vmatmul.mubr.f32.gmra.mrb[0].mxu0 %v524
        %v597 = vpop.f32.mrb[0].mxu0
        %v598 = vadd.f32 %v519, %v597
        %v599 = vpop.f32.mrb[0].mxu0
        %600 = vdwg.mxu0
        %s601 = scalar_lea.vmem %s1, 144
        %v602 = vld [vmem:[%s601] sm:$0xff]
        %v603 = vld [vmem:[%s601 + $0x8] sm:$0xff]
        %v604 = vld [vmem:[%s601 + $0x10] sm:$0xff]
        %v605 = vld [vmem:[%s601 + $0x18] sm:$0xff]
        %v606 = vld [vmem:[%s601 + $0x20] sm:$0xff]
        %v607 = vld [vmem:[%s601 + $0x28] sm:$0xff]
        %v608 = vld [vmem:[%s601 + $0x30] sm:$0xff]
        %v609 = vld [vmem:[%s601 + $0x38] sm:$0xff]
        %v610 = vld [vmem:[%s601 + $0x40] sm:$0xff]
        %vm611 = vcmask 1045504
        %v612 = vrot.slane %v411, 2
        %v613 = vrot.slane %v412, 2
        %v614 = vsel %vm611, %v612, %v613
        %v615 = vrot.slane %v413, 2
        %v616 = vsel %vm611, %v613, %v615
        %v617 = vsel %vm442, %v614, 0
        %v619 = vsel %vm442, %v616, 0
        %621 = vmatprep.subr.mxu0 0.0
        %622 = vmatpush1.msra.mxu0 %v602
        %623 = vmatprep.subr.mxu0 0.0
        %624 = vmatpush1.msra.mxu0 %v603
        %625 = vmatprep.subr.mxu0 0.0
        %626 = vmatpush1.msra.mxu0 %v604
        %627 = vmatprep.subr.mxu0 0.0
        %628 = vmatpush1.msra.mxu0 %v605
        %629 = vmatprep.subr.mxu0 0.0
        %630 = vmatpush1.msra.mxu0 %v606
        %631 = vmatprep.subr.mxu0 0.0
        %632 = vmatpush1.msra.mxu0 %v607
        %633 = vmatprep.subr.mxu0 0.0
        %634 = vmatpush1.msra.mxu0 %v608
        %635 = vmatprep.subr.mxu0 0.0
        %636 = vmatpush1.msra.mxu0 %v609
        %637 = vmatprep.subr.mxu0 0.0
        %638 = vmatpush1.msra.mxu0 %v610
        %639 = vmatprep.subr.mxu0 0.0
        %640 = vmatpush1.msra.mxu0 0.0
        %641 = vmatprep.subr.mxu0 0.0
        %642 = vmatpush1.msra.mxu0 0.0
        %643 = vmatprep.subr.mxu0 0.0
        %644 = vmatpush1.msra.mxu0 0.0
        %645 = vmatprep.subr.mxu0 0.0
        %646 = vmatpush1.msra.mxu0 0.0
        %647 = vmatprep.subr.mxu0 0.0
        %648 = vmatpush1.msra.mxu0 0.0
        %649 = vmatprep.subr.mxu0 0.0
        %650 = vmatpush1.msra.mxu0 0.0
        %651 = vmatprep.subr.mxu0 0.0
        %652 = vmatpush1.msra.mxu0 0.0
        %653 = vmatprep.subr.mxu0 0.0
        %654 = vmatpush1.msra.mxu0 0.0
        %655 = vmatprep.subr.mxu0 0.0
        %656 = vmatpush1.msra.mxu0 0.0
        %657 = vmatprep.subr.mxu0 0.0
        %658 = vmatpush1.msra.mxu0 0.0
        %659 = vmatprep.subr.mxu0 0.0
        %660 = vmatpush1.msra.mxu0 0.0
        %661 = vmatprep.subr.mxu0 0.0
        %662 = vmatpush1.msra.mxu0 0.0
        %663 = vmatprep.subr.mxu0 0.0
        %664 = vmatpush1.msra.mxu0 0.0
        %665 = vmatprep.subr.mxu0 0.0
        %666 = vmatpush1.msra.mxu0 0.0
        %667 = vmatprep.subr.mxu0 0.0
        %668 = vmatpush1.msra.mxu0 0.0
        %669 = vmatprep.subr.mxu0 0.0
        %670 = vmatpush1.msra.mxu0 0.0
        %671 = vmatprep.subr.mxu0 0.0
        %672 = vmatpush1.msra.mxu0 0.0
        %673 = vmatprep.subr.mxu0 0.0
        %674 = vmatpush1.msra.mxu0 0.0
        %675 = vmatprep.subr.mxu0 0.0
        %676 = vmatpush1.msra.mxu0 0.0
        %677 = vmatprep.subr.mxu0 0.0
        %678 = vmatpush1.msra.mxu0 0.0
        %679 = vmatprep.subr.mxu0 0.0
        %680 = vmatpush1.msra.mxu0 0.0
        %681 = vmatprep.subr.mxu0 0.0
        %682 = vmatpush1.msra.mxu0 0.0
        %683 = vmatprep.subr.mxu0 0.0
        %684 = vmatpush1.msra.mxu0 0.0
        %685 = vmatprep.mubr.f32.mxu0 0.0
        %686 = vmatmul.mubr.f32.gmra.mrb[0].mxu0 %v617
        %v687 = vpop.f32.mrb[0].mxu0
        %v688 = vadd.f32 0.0, %v687
        %v689 = vpop.f32.mrb[0].mxu0
        %690 = vmatprep.mubr.f32.mxu0 0.0
        %691 = vmatmul.mubr.f32.gmra.mrb[0].mxu0 %v619
        %v692 = vpop.f32.mrb[0].mxu0
        %v693 = vadd.f32 0.0, %v692
        %v694 = vpop.f32.mrb[0].mxu0
        %695 = vdwg.mxu0
        %v696 = vadd.f32 %v593, %v688
        %v697 = vadd.f32 %v598, %v693
        %v698 = vld [vmem:[%s2] sm:$0x1]
        %v700 = vlaneseq
        %v701 = vshrl.u32 %v700, 7
        %v702 = vsub.s32 0, %v701
        %v703 = vrot.slane %v698, %v702
        %v705 = vadd.f32 %v696, %v703
        %v706 = vadd.f32 %v697, %v703
        %v707 = vmax.f32 %v705, 0.0
        %v708 = vmax.f32 %v706, 0.0
        %v709 = vld [vmem:[%s3] sm:$0xff]
        %vm710 = vcmask 130048
        %v712 = vsel %vm710, %v709, 0
        %714 = vmatprep.subr.mxu0 0.0
        %715 = vmatpush1.msra.mxu0 %v707
        %716 = vmatprep.subr.mxu0 0.0
        %717 = vmatpush1.msra.mxu0 %v708
        %718 = vmatprep.subr.mxu0 0.0
        %719 = vmatpush1.msra.mxu0 0.0
        %720 = vmatprep.subr.mxu0 0.0
        %721 = vmatpush1.msra.mxu0 0.0
        %722 = vmatprep.subr.mxu0 0.0
        %723 = vmatpush1.msra.mxu0 0.0
        %724 = vmatprep.subr.mxu0 0.0
        %725 = vmatpush1.msra.mxu0 0.0
        %726 = vmatprep.subr.mxu0 0.0
        %727 = vmatpush1.msra.mxu0 0.0
        %728 = vmatprep.subr.mxu0 0.0
        %729 = vmatpush1.msra.mxu0 0.0
        %730 = vmatprep.subr.mxu0 0.0
        %731 = vmatpush1.msra.mxu0 0.0
        %732 = vmatprep.subr.mxu0 0.0
        %733 = vmatpush1.msra.mxu0 0.0
        %734 = vmatprep.subr.mxu0 0.0
        %735 = vmatpush1.msra.mxu0 0.0
        %736 = vmatprep.subr.mxu0 0.0
        %737 = vmatpush1.msra.mxu0 0.0
        %738 = vmatprep.subr.mxu0 0.0
        %739 = vmatpush1.msra.mxu0 0.0
        %740 = vmatprep.subr.mxu0 0.0
        %741 = vmatpush1.msra.mxu0 0.0
        %742 = vmatprep.subr.mxu0 0.0
        %743 = vmatpush1.msra.mxu0 0.0
        %744 = vmatprep.subr.mxu0 0.0
        %745 = vmatpush1.msra.mxu0 0.0
        %746 = vmatprep.subr.mxu0 0.0
        %747 = vmatpush1.msra.mxu0 0.0
        %748 = vmatprep.subr.mxu0 0.0
        %749 = vmatpush1.msra.mxu0 0.0
        %750 = vmatprep.subr.mxu0 0.0
        %751 = vmatpush1.msra.mxu0 0.0
        %752 = vmatprep.subr.mxu0 0.0
        %753 = vmatpush1.msra.mxu0 0.0
        %754 = vmatprep.subr.mxu0 0.0
        %755 = vmatpush1.msra.mxu0 0.0
        %756 = vmatprep.subr.mxu0 0.0
        %757 = vmatpush1.msra.mxu0 0.0
        %758 = vmatprep.subr.mxu0 0.0
        %759 = vmatpush1.msra.mxu0 0.0
        %760 = vmatprep.subr.mxu0 0.0
        %761 = vmatpush1.msra.mxu0 0.0
        %762 = vmatprep.subr.mxu0 0.0
        %763 = vmatpush1.msra.mxu0 0.0
        %764 = vmatprep.subr.mxu0 0.0
        %765 = vmatpush1.msra.mxu0 0.0
        %766 = vmatprep.subr.mxu0 0.0
        %767 = vmatpush1.msra.mxu0 0.0
        %768 = vmatprep.subr.mxu0 0.0
        %769 = vmatpush1.msra.mxu0 0.0
        %770 = vmatprep.subr.mxu0 0.0
        %771 = vmatpush1.msra.mxu0 0.0
        %772 = vmatprep.subr.mxu0 0.0
        %773 = vmatpush1.msra.mxu0 0.0
        %774 = vmatprep.subr.mxu0 0.0
        %775 = vmatpush1.msra.mxu0 0.0
        %776 = vmatprep.subr.mxu0 0.0
        %777 = vmatpush1.msra.mxu0 0.0
        %778 = vmatprep.mubr.f32.mxu0 0.0
        %779 = vmatmul.mubr.f32.gmra.mrb[0].mxu0 %v712
        %v780 = vpop.f32.mrb[0].mxu0
        %v781 = vadd.f32 0.0, %v780
        %v782 = vpop.f32.mrb[0].mxu0
        %783 = vdwg.mxu0
        %v784 = vld [vmem:[%s4] sm:$0xff]
        %v786 = vsel %vm710, %v784, 0
        %788 = vmatprep.subr.mxu0 0.0
        %789 = vmatpush1.msra.mxu0 %v707
        %790 = vmatprep.subr.mxu0 0.0
        %791 = vmatpush1.msra.mxu0 %v708
        %792 = vmatprep.subr.mxu0 0.0
        %793 = vmatpush1.msra.mxu0 0.0
        %794 = vmatprep.subr.mxu0 0.0
        %795 = vmatpush1.msra.mxu0 0.0
        %796 = vmatprep.subr.mxu0 0.0
        %797 = vmatpush1.msra.mxu0 0.0
        %798 = vmatprep.subr.mxu0 0.0
        %799 = vmatpush1.msra.mxu0 0.0
        %800 = vmatprep.subr.mxu0 0.0
        %801 = vmatpush1.msra.mxu0 0.0
        %802 = vmatprep.subr.mxu0 0.0
        %803 = vmatpush1.msra.mxu0 0.0
        %804 = vmatprep.subr.mxu0 0.0
        %805 = vmatpush1.msra.mxu0 0.0
        %806 = vmatprep.subr.mxu0 0.0
        %807 = vmatpush1.msra.mxu0 0.0
        %808 = vmatprep.subr.mxu0 0.0
        %809 = vmatpush1.msra.mxu0 0.0
        %810 = vmatprep.subr.mxu0 0.0
        %811 = vmatpush1.msra.mxu0 0.0
        %812 = vmatprep.subr.mxu0 0.0
        %813 = vmatpush1.msra.mxu0 0.0
        %814 = vmatprep.subr.mxu0 0.0
        %815 = vmatpush1.msra.mxu0 0.0
        %816 = vmatprep.subr.mxu0 0.0
        %817 = vmatpush1.msra.mxu0 0.0
        %818 = vmatprep.subr.mxu0 0.0
        %819 = vmatpush1.msra.mxu0 0.0
        %820 = vmatprep.subr.mxu0 0.0
        %821 = vmatpush1.msra.mxu0 0.0
        %822 = vmatprep.subr.mxu0 0.0
        %823 = vmatpush1.msra.mxu0 0.0
        %824 = vmatprep.subr.mxu0 0.0
        %825 = vmatpush1.msra.mxu0 0.0
        %826 = vmatprep.subr.mxu0 0.0
        %827 = vmatpush1.msra.mxu0 0.0
        %828 = vmatprep.subr.mxu0 0.0
        %829 = vmatpush1.msra.mxu0 0.0
        %830 = vmatprep.subr.mxu0 0.0
        %831 = vmatpush1.msra.mxu0 0.0
        %832 = vmatprep.subr.mxu0 0.0
        %833 = vmatpush1.msra.mxu0 0.0
        %834 = vmatprep.subr.mxu0 0.0
        %835 = vmatpush1.msra.mxu0 0.0
        %836 = vmatprep.subr.mxu0 0.0
        %837 = vmatpush1.msra.mxu0 0.0
        %838 = vmatprep.subr.mxu0 0.0
        %839 = vmatpush1.msra.mxu0 0.0
        %840 = vmatprep.subr.mxu0 0.0
        %841 = vmatpush1.msra.mxu0 0.0
        %842 = vmatprep.subr.mxu0 0.0
        %843 = vmatpush1.msra.mxu0 0.0
        %844 = vmatprep.subr.mxu0 0.0
        %845 = vmatpush1.msra.mxu0 0.0
        %846 = vmatprep.subr.mxu0 0.0
        %847 = vmatpush1.msra.mxu0 0.0
        %848 = vmatprep.subr.mxu0 0.0
        %849 = vmatpush1.msra.mxu0 0.0
        %850 = vmatprep.subr.mxu0 0.0
        %851 = vmatpush1.msra.mxu0 0.0
        %852 = vmatprep.mubr.f32.mxu0 0.0
        %853 = vmatmul.mubr.f32.gmra.mrb[0].mxu0 %v786
        %v854 = vpop.f32.mrb[0].mxu0
        %v855 = vadd.f32 0.0, %v854
        %v856 = vpop.f32.mrb[0].mxu0
        %857 = vdwg.mxu0
        %v858 = vmax.f32 %v781, %v855
        %v859 = vld [vmem:[%s5] sm:$0xff]
        %v860 = vld [vmem:[%s5 + $0x8] sm:$0xff]
        %v861 = vld [vmem:[%s5 + $0x10] sm:$0xff]
        %v862 = vld [vmem:[%s5 + $0x18] sm:$0xff]
        %v863 = vld [vmem:[%s5 + $0x20] sm:$0xff]
        %v864 = vld [vmem:[%s5 + $0x28] sm:$0xff]
        %v865 = vld [vmem:[%s5 + $0x30] sm:$0xff]
        %v866 = vld [vmem:[%s5 + $0x38] sm:$0xff]
        %v867 = vld [vmem:[%s5 + $0x40] sm:$0xff]
        %v868 = vld [vmem:[%s5 + $0x48] sm:$0xff]
        %v869 = vld [vmem:[%s5 + $0x50] sm:$0xff]
        %v870 = vld [vmem:[%s5 + $0x58] sm:$0xff]
        %v871 = vld [vmem:[%s5 + $0x60] sm:$0xff]
        %v872 = vld [vmem:[%s5 + $0x68] sm:$0xff]
        %v873 = vld [vmem:[%s5 + $0x70] sm:$0xff]
        %v874 = vld [vmem:[%s5 + $0x78] sm:$0xff]
        %875 = vmatprep.subr.mxu0 0.0
        %876 = vmatpush1.msra.mxu0 %v859
        %877 = vmatprep.subr.mxu0 0.0
        %878 = vmatpush1.msra.mxu0 %v860
        %879 = vmatprep.subr.mxu0 0.0
        %880 = vmatpush1.msra.mxu0 %v861
        %881 = vmatprep.subr.mxu0 0.0
        %882 = vmatpush1.msra.mxu0 %v862
        %883 = vmatprep.subr.mxu0 0.0
        %884 = vmatpush1.msra.mxu0 %v863
        %885 = vmatprep.subr.mxu0 0.0
        %886 = vmatpush1.msra.mxu0 %v864
        %887 = vmatprep.subr.mxu0 0.0
        %888 = vmatpush1.msra.mxu0 %v865
        %889 = vmatprep.subr.mxu0 0.0
        %890 = vmatpush1.msra.mxu0 %v866
        %891 = vmatprep.subr.mxu0 0.0
        %892 = vmatpush1.msra.mxu0 %v867
        %893 = vmatprep.subr.mxu0 0.0
        %894 = vmatpush1.msra.mxu0 %v868
        %895 = vmatprep.subr.mxu0 0.0
        %896 = vmatpush1.msra.mxu0 %v869
        %897 = vmatprep.subr.mxu0 0.0
        %898 = vmatpush1.msra.mxu0 %v870
        %899 = vmatprep.subr.mxu0 0.0
        %900 = vmatpush1.msra.mxu0 %v871
        %901 = vmatprep.subr.mxu0 0.0
        %902 = vmatpush1.msra.mxu0 %v872
        %903 = vmatprep.subr.mxu0 0.0
        %904 = vmatpush1.msra.mxu0 %v873
        %905 = vmatprep.subr.mxu0 0.0
        %906 = vmatpush1.msra.mxu0 %v874
        %907 = vmatprep.subr.mxu0 0.0
        %908 = vmatpush1.msra.mxu0 0.0
        %909 = vmatprep.subr.mxu0 0.0
        %910 = vmatpush1.msra.mxu0 0.0
        %911 = vmatprep.subr.mxu0 0.0
        %912 = vmatpush1.msra.mxu0 0.0
        %913 = vmatprep.subr.mxu0 0.0
        %914 = vmatpush1.msra.mxu0 0.0
        %915 = vmatprep.subr.mxu0 0.0
        %916 = vmatpush1.msra.mxu0 0.0
        %917 = vmatprep.subr.mxu0 0.0
        %918 = vmatpush1.msra.mxu0 0.0
        %919 = vmatprep.subr.mxu0 0.0
        %920 = vmatpush1.msra.mxu0 0.0
        %921 = vmatprep.subr.mxu0 0.0
        %922 = vmatpush1.msra.mxu0 0.0
        %923 = vmatprep.subr.mxu0 0.0
        %924 = vmatpush1.msra.mxu0 0.0
        %925 = vmatprep.subr.mxu0 0.0
        %926 = vmatpush1.msra.mxu0 0.0
        %927 = vmatprep.subr.mxu0 0.0
        %928 = vmatpush1.msra.mxu0 0.0
        %929 = vmatprep.subr.mxu0 0.0
        %930 = vmatpush1.msra.mxu0 0.0
        %931 = vmatprep.subr.mxu0 0.0
        %932 = vmatpush1.msra.mxu0 0.0
        %933 = vmatprep.subr.mxu0 0.0
        %934 = vmatpush1.msra.mxu0 0.0
        %935 = vmatprep.subr.mxu0 0.0
        %936 = vmatpush1.msra.mxu0 0.0
        %937 = vmatprep.subr.mxu0 0.0
        %938 = vmatpush1.msra.mxu0 0.0
        %939 = vmatprep.mubr.f32.mxu0 0.0
        %940 = vmatmul.mubr.f32.gmra.mrb[0].mxu0 %v858
        %v941 = vpop.f32.mrb[0].mxu0
        %v942 = vadd.f32 0.0, %v941
        %v943 = vpop.f32.mrb[0].mxu0
        %944 = vdwg.mxu0
        %v945 = vld [vmem:[%s6] sm:$0xff]
        %v946 = vld [vmem:[%s6 + $0x8] sm:$0xff]
        %v947 = vld [vmem:[%s6 + $0x10] sm:$0xff]
        %v948 = vld [vmem:[%s6 + $0x18] sm:$0xff]
        %v949 = vld [vmem:[%s6 + $0x20] sm:$0xff]
        %v950 = vld [vmem:[%s6 + $0x28] sm:$0xff]
        %v951 = vld [vmem:[%s6 + $0x30] sm:$0xff]
        %v952 = vld [vmem:[%s6 + $0x38] sm:$0xff]
        %v953 = vld [vmem:[%s6 + $0x40] sm:$0xff]
        %v954 = vld [vmem:[%s6 + $0x48] sm:$0xff]
        %v955 = vld [vmem:[%s6 + $0x50] sm:$0xff]
        %v956 = vld [vmem:[%s6 + $0x58] sm:$0xff]
        %v957 = vld [vmem:[%s6 + $0x60] sm:$0xff]
        %v958 = vld [vmem:[%s6 + $0x68] sm:$0xff]
        %v959 = vld [vmem:[%s6 + $0x70] sm:$0xff]
        %v960 = vld [vmem:[%s6 + $0x78] sm:$0xff]
        %961 = vmatprep.subr.mxu0 0.0
        %962 = vmatpush1.msra.mxu0 %v945
        %963 = vmatprep.subr.mxu0 0.0
        %964 = vmatpush1.msra.mxu0 %v946
        %965 = vmatprep.subr.mxu0 0.0
        %966 = vmatpush1.msra.mxu0 %v947
        %967 = vmatprep.subr.mxu0 0.0
        %968 = vmatpush1.msra.mxu0 %v948
        %969 = vmatprep.subr.mxu0 0.0
        %970 = vmatpush1.msra.mxu0 %v949
        %971 = vmatprep.subr.mxu0 0.0
        %972 = vmatpush1.msra.mxu0 %v950
        %973 = vmatprep.subr.mxu0 0.0
        %974 = vmatpush1.msra.mxu0 %v951
        %975 = vmatprep.subr.mxu0 0.0
        %976 = vmatpush1.msra.mxu0 %v952
        %977 = vmatprep.subr.mxu0 0.0
        %978 = vmatpush1.msra.mxu0 %v953
        %979 = vmatprep.subr.mxu0 0.0
        %980 = vmatpush1.msra.mxu0 %v954
        %981 = vmatprep.subr.mxu0 0.0
        %982 = vmatpush1.msra.mxu0 %v955
        %983 = vmatprep.subr.mxu0 0.0
        %984 = vmatpush1.msra.mxu0 %v956
        %985 = vmatprep.subr.mxu0 0.0
        %986 = vmatpush1.msra.mxu0 %v957
        %987 = vmatprep.subr.mxu0 0.0
        %988 = vmatpush1.msra.mxu0 %v958
        %989 = vmatprep.subr.mxu0 0.0
        %990 = vmatpush1.msra.mxu0 %v959
        %991 = vmatprep.subr.mxu0 0.0
        %992 = vmatpush1.msra.mxu0 %v960
        %993 = vmatprep.subr.mxu0 0.0
        %994 = vmatpush1.msra.mxu0 0.0
        %995 = vmatprep.subr.mxu0 0.0
        %996 = vmatpush1.msra.mxu0 0.0
        %997 = vmatprep.subr.mxu0 0.0
        %998 = vmatpush1.msra.mxu0 0.0
        %999 = vmatprep.subr.mxu0 0.0
        %1000 = vmatpush1.msra.mxu0 0.0
        %1001 = vmatprep.subr.mxu0 0.0
        %1002 = vmatpush1.msra.mxu0 0.0
        %1003 = vmatprep.subr.mxu0 0.0
        %1004 = vmatpush1.msra.mxu0 0.0
        %1005 = vmatprep.subr.mxu0 0.0
        %1006 = vmatpush1.msra.mxu0 0.0
        %1007 = vmatprep.subr.mxu0 0.0
        %1008 = vmatpush1.msra.mxu0 0.0
        %1009 = vmatprep.subr.mxu0 0.0
        %1010 = vmatpush1.msra.mxu0 0.0
        %1011 = vmatprep.subr.mxu0 0.0
        %1012 = vmatpush1.msra.mxu0 0.0
        %1013 = vmatprep.subr.mxu0 0.0
        %1014 = vmatpush1.msra.mxu0 0.0
        %1015 = vmatprep.subr.mxu0 0.0
        %1016 = vmatpush1.msra.mxu0 0.0
        %1017 = vmatprep.subr.mxu0 0.0
        %1018 = vmatpush1.msra.mxu0 0.0
        %1019 = vmatprep.subr.mxu0 0.0
        %1020 = vmatpush1.msra.mxu0 0.0
        %1021 = vmatprep.subr.mxu0 0.0
        %1022 = vmatpush1.msra.mxu0 0.0
        %1023 = vmatprep.subr.mxu0 0.0
        %1024 = vmatpush1.msra.mxu0 0.0
        %1025 = vmatprep.mubr.f32.mxu0 0.0
        %1026 = vmatmul.mubr.f32.gmra.mrb[0].mxu0 %v858
        %v1027 = vpop.f32.mrb[0].mxu0
        %v1028 = vadd.f32 0.0, %v1027
        %v1029 = vpop.f32.mrb[0].mxu0
        %1030 = vdwg.mxu0
        %v1031 = vmax.f32 %v942, %v1028
        %v1032 = vld [vmem:[%s7] sm:$0xff]
        %vm1033 = vcmask 64512
        %v1035 = vsel %vm1033, %v1032, 0
        %1037 = vmatprep.subr.mxu0 0.0
        %1038 = vmatpush1.msra.mxu0 %v1031
        %1039 = vmatprep.subr.mxu0 0.0
        %1040 = vmatpush1.msra.mxu0 0.0
        %1041 = vmatprep.subr.mxu0 0.0
        %1042 = vmatpush1.msra.mxu0 0.0
        %1043 = vmatprep.subr.mxu0 0.0
        %1044 = vmatpush1.msra.mxu0 0.0
        %1045 = vmatprep.subr.mxu0 0.0
        %1046 = vmatpush1.msra.mxu0 0.0
        %1047 = vmatprep.subr.mxu0 0.0
        %1048 = vmatpush1.msra.mxu0 0.0
        %1049 = vmatprep.subr.mxu0 0.0
        %1050 = vmatpush1.msra.mxu0 0.0
        %1051 = vmatprep.subr.mxu0 0.0
        %1052 = vmatpush1.msra.mxu0 0.0
        %1053 = vmatprep.subr.mxu0 0.0
        %1054 = vmatpush1.msra.mxu0 0.0
        %1055 = vmatprep.subr.mxu0 0.0
        %1056 = vmatpush1.msra.mxu0 0.0
        %1057 = vmatprep.subr.mxu0 0.0
        %1058 = vmatpush1.msra.mxu0 0.0
        %1059 = vmatprep.subr.mxu0 0.0
        %1060 = vmatpush1.msra.mxu0 0.0
        %1061 = vmatprep.subr.mxu0 0.0
        %1062 = vmatpush1.msra.mxu0 0.0
        %1063 = vmatprep.subr.mxu0 0.0
        %1064 = vmatpush1.msra.mxu0 0.0
        %1065 = vmatprep.subr.mxu0 0.0
        %1066 = vmatpush1.msra.mxu0 0.0
        %1067 = vmatprep.subr.mxu0 0.0
        %1068 = vmatpush1.msra.mxu0 0.0
        %1069 = vmatprep.subr.mxu0 0.0
        %1070 = vmatpush1.msra.mxu0 0.0
        %1071 = vmatprep.subr.mxu0 0.0
        %1072 = vmatpush1.msra.mxu0 0.0
        %1073 = vmatprep.subr.mxu0 0.0
        %1074 = vmatpush1.msra.mxu0 0.0
        %1075 = vmatprep.subr.mxu0 0.0
        %1076 = vmatpush1.msra.mxu0 0.0
        %1077 = vmatprep.subr.mxu0 0.0
        %1078 = vmatpush1.msra.mxu0 0.0
        %1079 = vmatprep.subr.mxu0 0.0
        %1080 = vmatpush1.msra.mxu0 0.0
        %1081 = vmatprep.subr.mxu0 0.0
        %1082 = vmatpush1.msra.mxu0 0.0
        %1083 = vmatprep.subr.mxu0 0.0
        %1084 = vmatpush1.msra.mxu0 0.0
        %1085 = vmatprep.subr.mxu0 0.0
        %1086 = vmatpush1.msra.mxu0 0.0
        %1087 = vmatprep.subr.mxu0 0.0
        %1088 = vmatpush1.msra.mxu0 0.0
        %1089 = vmatprep.subr.mxu0 0.0
        %1090 = vmatpush1.msra.mxu0 0.0
        %1091 = vmatprep.subr.mxu0 0.0
        %1092 = vmatpush1.msra.mxu0 0.0
        %1093 = vmatprep.subr.mxu0 0.0
        %1094 = vmatpush1.msra.mxu0 0.0
        %1095 = vmatprep.subr.mxu0 0.0
        %1096 = vmatpush1.msra.mxu0 0.0
        %1097 = vmatprep.subr.mxu0 0.0
        %1098 = vmatpush1.msra.mxu0 0.0
        %1099 = vmatprep.subr.mxu0 0.0
        %1100 = vmatpush1.msra.mxu0 0.0
        %1101 = vmatprep.mubr.f32.mxu0 0.0
        %1102 = vmatmul.mubr.f32.gmra.mrb[0].mxu0 %v1035
        %v1103 = vpop.f32.mrb[0].mxu0
        %v1104 = vadd.f32 0.0, %v1103
        %v1105 = vpop.f32.mrb[0].mxu0
        %1106 = vdwg.mxu0
        %v1107 = vld [vmem:[%s8] sm:$0xff]
        %v1108 = vld [vmem:[%s8 + $0x8] sm:$0xff]
        %v1109 = vld [vmem:[%s8 + $0x10] sm:$0xff]
        %v1110 = vld [vmem:[%s8 + $0x18] sm:$0xff]
        %v1111 = vld [vmem:[%s8 + $0x20] sm:$0xff]
        %v1112 = vld [vmem:[%s8 + $0x28] sm:$0xff]
        %v1113 = vld [vmem:[%s8 + $0x30] sm:$0xff]
        %v1114 = vld [vmem:[%s8 + $0x38] sm:$0xff]
        %s1115 = scalar_lea.vmem %s7, 8
        %v1116 = vld [vmem:[%s1115] sm:$0xff]
        %v1118 = vsel %vm1033, %v1116, 0
        %1120 = vmatprep.subr.mxu0 0.0
        %1121 = vmatpush1.msra.mxu0 %v1031
        %1122 = vmatprep.subr.mxu0 0.0
        %1123 = vmatpush1.msra.mxu0 0.0
        %1124 = vmatprep.subr.mxu0 0.0
        %1125 = vmatpush1.msra.mxu0 0.0
        %1126 = vmatprep.subr.mxu0 0.0
        %1127 = vmatpush1.msra.mxu0 0.0
        %1128 = vmatprep.subr.mxu0 0.0
        %1129 = vmatpush1.msra.mxu0 0.0
        %1130 = vmatprep.subr.mxu0 0.0
        %1131 = vmatpush1.msra.mxu0 0.0
        %1132 = vmatprep.subr.mxu0 0.0
        %1133 = vmatpush1.msra.mxu0 0.0
        %1134 = vmatprep.subr.mxu0 0.0
        %1135 = vmatpush1.msra.mxu0 0.0
        %1136 = vmatprep.subr.mxu0 0.0
        %1137 = vmatpush1.msra.mxu0 0.0
        %1138 = vmatprep.subr.mxu0 0.0
        %1139 = vmatpush1.msra.mxu0 0.0
        %1140 = vmatprep.subr.mxu0 0.0
        %1141 = vmatpush1.msra.mxu0 0.0
        %1142 = vmatprep.subr.mxu0 0.0
        %1143 = vmatpush1.msra.mxu0 0.0
        %1144 = vmatprep.subr.mxu0 0.0
        %1145 = vmatpush1.msra.mxu0 0.0
        %1146 = vmatprep.subr.mxu0 0.0
        %1147 = vmatpush1.msra.mxu0 0.0
        %1148 = vmatprep.subr.mxu0 0.0
        %1149 = vmatpush1.msra.mxu0 0.0
        %1150 = vmatprep.subr.mxu0 0.0
        %1151 = vmatpush1.msra.mxu0 0.0
        %1152 = vmatprep.subr.mxu0 0.0
        %1153 = vmatpush1.msra.mxu0 0.0
        %1154 = vmatprep.subr.mxu0 0.0
        %1155 = vmatpush1.msra.mxu0 0.0
        %1156 = vmatprep.subr.mxu0 0.0
        %1157 = vmatpush1.msra.mxu0 0.0
        %1158 = vmatprep.subr.mxu0 0.0
        %1159 = vmatpush1.msra.mxu0 0.0
        %1160 = vmatprep.subr.mxu0 0.0
        %1161 = vmatpush1.msra.mxu0 0.0
        %1162 = vmatprep.subr.mxu0 0.0
        %1163 = vmatpush1.msra.mxu0 0.0
        %1164 = vmatprep.subr.mxu0 0.0
        %1165 = vmatpush1.msra.mxu0 0.0
        %1166 = vmatprep.subr.mxu0 0.0
        %1167 = vmatpush1.msra.mxu0 0.0
        %1168 = vmatprep.subr.mxu0 0.0
        %1169 = vmatpush1.msra.mxu0 0.0
        %1170 = vmatprep.subr.mxu0 0.0
        %1171 = vmatpush1.msra.mxu0 0.0
        %1172 = vmatprep.subr.mxu0 0.0
        %1173 = vmatpush1.msra.mxu0 0.0
        %1174 = vmatprep.subr.mxu0 0.0
        %1175 = vmatpush1.msra.mxu0 0.0
        %1176 = vmatprep.subr.mxu0 0.0
        %1177 = vmatpush1.msra.mxu0 0.0
        %1178 = vmatprep.subr.mxu0 0.0
        %1179 = vmatpush1.msra.mxu0 0.0
        %1180 = vmatprep.subr.mxu0 0.0
        %1181 = vmatpush1.msra.mxu0 0.0
        %1182 = vmatprep.subr.mxu0 0.0
        %1183 = vmatpush1.msra.mxu0 0.0
        %1184 = vmatprep.mubr.f32.mxu0 0.0
        %1185 = vmatmul.mubr.f32.gmra.mrb[0].mxu0 %v1118
        %v1186 = vpop.f32.mrb[0].mxu0
        %v1187 = vadd.f32 0.0, %v1186
        %v1188 = vpop.f32.mrb[0].mxu0
        %1189 = vdwg.mxu0
        %s1190 = scalar_lea.vmem %s8, 64
        %v1191 = vld [vmem:[%s1190] sm:$0xff]
        %v1192 = vld [vmem:[%s1190 + $0x8] sm:$0xff]
        %v1193 = vld [vmem:[%s1190 + $0x10] sm:$0xff]
        %v1194 = vld [vmem:[%s1190 + $0x18] sm:$0xff]
        %v1195 = vld [vmem:[%s1190 + $0x20] sm:$0xff]
        %v1196 = vld [vmem:[%s1190 + $0x28] sm:$0xff]
        %v1197 = vld [vmem:[%s1190 + $0x30] sm:$0xff]
        %v1198 = vld [vmem:[%s1190 + $0x38] sm:$0xff]
        %vm1199 = vcmask 523264
        %v1201 = vsel %vm1199, %v1187, 0
        %1203 = vmatprep.subr.mxu0 0.0
        %1204 = vmatpush1.msra.mxu0 %v1191
        %1205 = vmatprep.subr.mxu0 0.0
        %1206 = vmatpush1.msra.mxu0 %v1192
        %1207 = vmatprep.subr.mxu0 0.0
        %1208 = vmatpush1.msra.mxu0 %v1193
        %1209 = vmatprep.subr.mxu0 0.0
        %1210 = vmatpush1.msra.mxu0 %v1194
        %1211 = vmatprep.subr.mxu0 0.0
        %1212 = vmatpush1.msra.mxu0 %v1195
        %1213 = vmatprep.subr.mxu0 0.0
        %1214 = vmatpush1.msra.mxu0 %v1196
        %1215 = vmatprep.subr.mxu0 0.0
        %1216 = vmatpush1.msra.mxu0 %v1197
        %1217 = vmatprep.subr.mxu0 0.0
        %1218 = vmatpush1.msra.mxu0 %v1198
        %1219 = vmatprep.subr.mxu0 0.0
        %1220 = vmatpush1.msra.mxu0 0.0
        %1221 = vmatprep.subr.mxu0 0.0
        %1222 = vmatpush1.msra.mxu0 0.0
        %1223 = vmatprep.subr.mxu0 0.0
        %1224 = vmatpush1.msra.mxu0 0.0
        %1225 = vmatprep.subr.mxu0 0.0
        %1226 = vmatpush1.msra.mxu0 0.0
        %1227 = vmatprep.subr.mxu0 0.0
        %1228 = vmatpush1.msra.mxu0 0.0
        %1229 = vmatprep.subr.mxu0 0.0
        %1230 = vmatpush1.msra.mxu0 0.0
        %1231 = vmatprep.subr.mxu0 0.0
        %1232 = vmatpush1.msra.mxu0 0.0
        %1233 = vmatprep.subr.mxu0 0.0
        %1234 = vmatpush1.msra.mxu0 0.0
        %1235 = vmatprep.subr.mxu0 0.0
        %1236 = vmatpush1.msra.mxu0 0.0
        %1237 = vmatprep.subr.mxu0 0.0
        %1238 = vmatpush1.msra.mxu0 0.0
        %1239 = vmatprep.subr.mxu0 0.0
        %1240 = vmatpush1.msra.mxu0 0.0
        %1241 = vmatprep.subr.mxu0 0.0
        %1242 = vmatpush1.msra.mxu0 0.0
        %1243 = vmatprep.subr.mxu0 0.0
        %1244 = vmatpush1.msra.mxu0 0.0
        %1245 = vmatprep.subr.mxu0 0.0
        %1246 = vmatpush1.msra.mxu0 0.0
        %1247 = vmatprep.subr.mxu0 0.0
        %1248 = vmatpush1.msra.mxu0 0.0
        %1249 = vmatprep.subr.mxu0 0.0
        %1250 = vmatpush1.msra.mxu0 0.0
        %1251 = vmatprep.subr.mxu0 0.0
        %1252 = vmatpush1.msra.mxu0 0.0
        %1253 = vmatprep.subr.mxu0 0.0
        %1254 = vmatpush1.msra.mxu0 0.0
        %1255 = vmatprep.subr.mxu0 0.0
        %1256 = vmatpush1.msra.mxu0 0.0
        %1257 = vmatprep.subr.mxu0 0.0
        %1258 = vmatpush1.msra.mxu0 0.0
        %1259 = vmatprep.subr.mxu0 0.0
        %1260 = vmatpush1.msra.mxu0 0.0
        %1261 = vmatprep.subr.mxu0 0.0
        %1262 = vmatpush1.msra.mxu0 0.0
        %1263 = vmatprep.subr.mxu0 0.0
        %1264 = vmatpush1.msra.mxu0 0.0
        %1265 = vmatprep.subr.mxu0 0.0
        %1266 = vmatpush1.msra.mxu0 0.0
        %1267 = vmatprep.mubr.f32.mxu0 0.0
        %1268 = vmatmul.mubr.f32.gmra.mrb[0].mxu0 %v1201
        %v1269 = vpop.f32.mrb[0].mxu0
        %v1270 = vadd.f32 0.0, %v1269
        %v1271 = vpop.f32.mrb[0].mxu0
        %1272 = vdwg.mxu0
        %v1274 = vsel %vm1199, %v1104, 0
        %1276 = vmatprep.subr.mxu0 0.0
        %1277 = vmatpush1.msra.mxu0 %v1107
        %1278 = vmatprep.subr.mxu0 0.0
        %1279 = vmatpush1.msra.mxu0 %v1108
        %1280 = vmatprep.subr.mxu0 0.0
        %1281 = vmatpush1.msra.mxu0 %v1109
        %1282 = vmatprep.subr.mxu0 0.0
        %1283 = vmatpush1.msra.mxu0 %v1110
        %1284 = vmatprep.subr.mxu0 0.0
        %1285 = vmatpush1.msra.mxu0 %v1111
        %1286 = vmatprep.subr.mxu0 0.0
        %1287 = vmatpush1.msra.mxu0 %v1112
        %1288 = vmatprep.subr.mxu0 0.0
        %1289 = vmatpush1.msra.mxu0 %v1113
        %1290 = vmatprep.subr.mxu0 0.0
        %1291 = vmatpush1.msra.mxu0 %v1114
        %1292 = vmatprep.subr.mxu0 0.0
        %1293 = vmatpush1.msra.mxu0 0.0
        %1294 = vmatprep.subr.mxu0 0.0
        %1295 = vmatpush1.msra.mxu0 0.0
        %1296 = vmatprep.subr.mxu0 0.0
        %1297 = vmatpush1.msra.mxu0 0.0
        %1298 = vmatprep.subr.mxu0 0.0
        %1299 = vmatpush1.msra.mxu0 0.0
        %1300 = vmatprep.subr.mxu0 0.0
        %1301 = vmatpush1.msra.mxu0 0.0
        %1302 = vmatprep.subr.mxu0 0.0
        %1303 = vmatpush1.msra.mxu0 0.0
        %1304 = vmatprep.subr.mxu0 0.0
        %1305 = vmatpush1.msra.mxu0 0.0
        %1306 = vmatprep.subr.mxu0 0.0
        %1307 = vmatpush1.msra.mxu0 0.0
        %1308 = vmatprep.subr.mxu0 0.0
        %1309 = vmatpush1.msra.mxu0 0.0
        %1310 = vmatprep.subr.mxu0 0.0
        %1311 = vmatpush1.msra.mxu0 0.0
        %1312 = vmatprep.subr.mxu0 0.0
        %1313 = vmatpush1.msra.mxu0 0.0
        %1314 = vmatprep.subr.mxu0 0.0
        %1315 = vmatpush1.msra.mxu0 0.0
        %1316 = vmatprep.subr.mxu0 0.0
        %1317 = vmatpush1.msra.mxu0 0.0
        %1318 = vmatprep.subr.mxu0 0.0
        %1319 = vmatpush1.msra.mxu0 0.0
        %1320 = vmatprep.subr.mxu0 0.0
        %1321 = vmatpush1.msra.mxu0 0.0
        %1322 = vmatprep.subr.mxu0 0.0
        %1323 = vmatpush1.msra.mxu0 0.0
        %1324 = vmatprep.subr.mxu0 0.0
        %1325 = vmatpush1.msra.mxu0 0.0
        %1326 = vmatprep.subr.mxu0 0.0
        %1327 = vmatpush1.msra.mxu0 0.0
        %1328 = vmatprep.subr.mxu0 0.0
        %1329 = vmatpush1.msra.mxu0 0.0
        %1330 = vmatprep.subr.mxu0 0.0
        %1331 = vmatpush1.msra.mxu0 0.0
        %1332 = vmatprep.subr.mxu0 0.0
        %1333 = vmatpush1.msra.mxu0 0.0
        %1334 = vmatprep.subr.mxu0 0.0
        %1335 = vmatpush1.msra.mxu0 0.0
        %1336 = vmatprep.subr.mxu0 0.0
        %1337 = vmatpush1.msra.mxu0 0.0
        %1338 = vmatprep.subr.mxu0 0.0
        %1339 = vmatpush1.msra.mxu0 0.0
        %1340 = vmatprep.mubr.f32.mxu0 0.0
        %1341 = vmatmul.mubr.f32.gmra.mrb[0].mxu0 %v1274
        %v1342 = vpop.f32.mrb[0].mxu0
        %v1343 = vadd.f32 %v1270, %v1342
        %v1344 = vpop.f32.mrb[0].mxu0
        %1345 = vdwg.mxu0
        %s1346 = scalar_lea.vmem %s7, 16
        %v1347 = vld [vmem:[%s1346] sm:$0xff]
        %v1349 = vsel %vm1033, %v1347, 0
        %1351 = vmatprep.subr.mxu0 0.0
        %1352 = vmatpush1.msra.mxu0 %v1031
        %1353 = vmatprep.subr.mxu0 0.0
        %1354 = vmatpush1.msra.mxu0 0.0
        %1355 = vmatprep.subr.mxu0 0.0
        %1356 = vmatpush1.msra.mxu0 0.0
        %1357 = vmatprep.subr.mxu0 0.0
        %1358 = vmatpush1.msra.mxu0 0.0
        %1359 = vmatprep.subr.mxu0 0.0
        %1360 = vmatpush1.msra.mxu0 0.0
        %1361 = vmatprep.subr.mxu0 0.0
        %1362 = vmatpush1.msra.mxu0 0.0
        %1363 = vmatprep.subr.mxu0 0.0
        %1364 = vmatpush1.msra.mxu0 0.0
        %1365 = vmatprep.subr.mxu0 0.0
        %1366 = vmatpush1.msra.mxu0 0.0
        %1367 = vmatprep.subr.mxu0 0.0
        %1368 = vmatpush1.msra.mxu0 0.0
        %1369 = vmatprep.subr.mxu0 0.0
        %1370 = vmatpush1.msra.mxu0 0.0
        %1371 = vmatprep.subr.mxu0 0.0
        %1372 = vmatpush1.msra.mxu0 0.0
        %1373 = vmatprep.subr.mxu0 0.0
        %1374 = vmatpush1.msra.mxu0 0.0
        %1375 = vmatprep.subr.mxu0 0.0
        %1376 = vmatpush1.msra.mxu0 0.0
        %1377 = vmatprep.subr.mxu0 0.0
        %1378 = vmatpush1.msra.mxu0 0.0
        %1379 = vmatprep.subr.mxu0 0.0
        %1380 = vmatpush1.msra.mxu0 0.0
        %1381 = vmatprep.subr.mxu0 0.0
        %1382 = vmatpush1.msra.mxu0 0.0
        %1383 = vmatprep.subr.mxu0 0.0
        %1384 = vmatpush1.msra.mxu0 0.0
        %1385 = vmatprep.subr.mxu0 0.0
        %1386 = vmatpush1.msra.mxu0 0.0
        %1387 = vmatprep.subr.mxu0 0.0
        %1388 = vmatpush1.msra.mxu0 0.0
        %1389 = vmatprep.subr.mxu0 0.0
        %1390 = vmatpush1.msra.mxu0 0.0
        %1391 = vmatprep.subr.mxu0 0.0
        %1392 = vmatpush1.msra.mxu0 0.0
        %1393 = vmatprep.subr.mxu0 0.0
        %1394 = vmatpush1.msra.mxu0 0.0
        %1395 = vmatprep.subr.mxu0 0.0
        %1396 = vmatpush1.msra.mxu0 0.0
        %1397 = vmatprep.subr.mxu0 0.0
        %1398 = vmatpush1.msra.mxu0 0.0
        %1399 = vmatprep.subr.mxu0 0.0
        %1400 = vmatpush1.msra.mxu0 0.0
        %1401 = vmatprep.subr.mxu0 0.0
        %1402 = vmatpush1.msra.mxu0 0.0
        %1403 = vmatprep.subr.mxu0 0.0
        %1404 = vmatpush1.msra.mxu0 0.0
        %1405 = vmatprep.subr.mxu0 0.0
        %1406 = vmatpush1.msra.mxu0 0.0
        %1407 = vmatprep.subr.mxu0 0.0
        %1408 = vmatpush1.msra.mxu0 0.0
        %1409 = vmatprep.subr.mxu0 0.0
        %1410 = vmatpush1.msra.mxu0 0.0
        %1411 = vmatprep.subr.mxu0 0.0
        %1412 = vmatpush1.msra.mxu0 0.0
        %1413 = vmatprep.subr.mxu0 0.0
        %1414 = vmatpush1.msra.mxu0 0.0
        %1415 = vmatprep.mubr.f32.mxu0 0.0
        %1416 = vmatmul.mubr.f32.gmra.mrb[0].mxu0 %v1349
        %v1417 = vpop.f32.mrb[0].mxu0
        %v1418 = vadd.f32 0.0, %v1417
        %v1419 = vpop.f32.mrb[0].mxu0
        %1420 = vdwg.mxu0
        %s1421 = scalar_lea.vmem %s8, 128
        %v1422 = vld [vmem:[%s1421] sm:$0xff]
        %v1423 = vld [vmem:[%s1421 + $0x8] sm:$0xff]
        %v1424 = vld [vmem:[%s1421 + $0x10] sm:$0xff]
        %v1425 = vld [vmem:[%s1421 + $0x18] sm:$0xff]
        %v1426 = vld [vmem:[%s1421 + $0x20] sm:$0xff]
        %v1427 = vld [vmem:[%s1421 + $0x28] sm:$0xff]
        %v1428 = vld [vmem:[%s1421 + $0x30] sm:$0xff]
        %v1429 = vld [vmem:[%s1421 + $0x38] sm:$0xff]
        %v1431 = vsel %vm1199, %v1418, 0
        %1433 = vmatprep.subr.mxu0 0.0
        %1434 = vmatpush1.msra.mxu0 %v1422
        %1435 = vmatprep.subr.mxu0 0.0
        %1436 = vmatpush1.msra.mxu0 %v1423
        %1437 = vmatprep.subr.mxu0 0.0
        %1438 = vmatpush1.msra.mxu0 %v1424
        %1439 = vmatprep.subr.mxu0 0.0
        %1440 = vmatpush1.msra.mxu0 %v1425
        %1441 = vmatprep.subr.mxu0 0.0
        %1442 = vmatpush1.msra.mxu0 %v1426
        %1443 = vmatprep.subr.mxu0 0.0
        %1444 = vmatpush1.msra.mxu0 %v1427
        %1445 = vmatprep.subr.mxu0 0.0
        %1446 = vmatpush1.msra.mxu0 %v1428
        %1447 = vmatprep.subr.mxu0 0.0
        %1448 = vmatpush1.msra.mxu0 %v1429
        %1449 = vmatprep.subr.mxu0 0.0
        %1450 = vmatpush1.msra.mxu0 0.0
        %1451 = vmatprep.subr.mxu0 0.0
        %1452 = vmatpush1.msra.mxu0 0.0
        %1453 = vmatprep.subr.mxu0 0.0
        %1454 = vmatpush1.msra.mxu0 0.0
        %1455 = vmatprep.subr.mxu0 0.0
        %1456 = vmatpush1.msra.mxu0 0.0
        %1457 = vmatprep.subr.mxu0 0.0
        %1458 = vmatpush1.msra.mxu0 0.0
        %1459 = vmatprep.subr.mxu0 0.0
        %1460 = vmatpush1.msra.mxu0 0.0
        %1461 = vmatprep.subr.mxu0 0.0
        %1462 = vmatpush1.msra.mxu0 0.0
        %1463 = vmatprep.subr.mxu0 0.0
        %1464 = vmatpush1.msra.mxu0 0.0
        %1465 = vmatprep.subr.mxu0 0.0
        %1466 = vmatpush1.msra.mxu0 0.0
        %1467 = vmatprep.subr.mxu0 0.0
        %1468 = vmatpush1.msra.mxu0 0.0
        %1469 = vmatprep.subr.mxu0 0.0
        %1470 = vmatpush1.msra.mxu0 0.0
        %1471 = vmatprep.subr.mxu0 0.0
        %1472 = vmatpush1.msra.mxu0 0.0
        %1473 = vmatprep.subr.mxu0 0.0
        %1474 = vmatpush1.msra.mxu0 0.0
        %1475 = vmatprep.subr.mxu0 0.0
        %1476 = vmatpush1.msra.mxu0 0.0
        %1477 = vmatprep.subr.mxu0 0.0
        %1478 = vmatpush1.msra.mxu0 0.0
        %1479 = vmatprep.subr.mxu0 0.0
        %1480 = vmatpush1.msra.mxu0 0.0
        %1481 = vmatprep.subr.mxu0 0.0
        %1482 = vmatpush1.msra.mxu0 0.0
        %1483 = vmatprep.subr.mxu0 0.0
        %1484 = vmatpush1.msra.mxu0 0.0
        %1485 = vmatprep.subr.mxu0 0.0
        %1486 = vmatpush1.msra.mxu0 0.0
        %1487 = vmatprep.subr.mxu0 0.0
        %1488 = vmatpush1.msra.mxu0 0.0
        %1489 = vmatprep.subr.mxu0 0.0
        %1490 = vmatpush1.msra.mxu0 0.0
        %1491 = vmatprep.subr.mxu0 0.0
        %1492 = vmatpush1.msra.mxu0 0.0
        %1493 = vmatprep.subr.mxu0 0.0
        %1494 = vmatpush1.msra.mxu0 0.0
        %1495 = vmatprep.subr.mxu0 0.0
        %1496 = vmatpush1.msra.mxu0 0.0
        %1497 = vmatprep.mubr.f32.mxu0 0.0
        %1498 = vmatmul.mubr.f32.gmra.mrb[0].mxu0 %v1431
        %v1499 = vpop.f32.mrb[0].mxu0
        %v1500 = vadd.f32 0.0, %v1499
        %v1501 = vpop.f32.mrb[0].mxu0
        %1502 = vdwg.mxu0
        %v1503 = vadd.f32 %v1343, %v1500
        %v1504 = vld [vmem:[%s9] sm:$0x1]
        %v1506 = vlaneseq
        %v1507 = vshrl.u32 %v1506, 7
        %v1508 = vsub.s32 0, %v1507
        %v1509 = vrot.slane %v1504, %v1508
        %v1511 = vadd.f32 %v1503, %v1509
        %v1512 = vmax.f32 %v1511, 0.0
        %v1513 = vld [vmem:[%s11] sm:$0x1]
        %v1514 = vld [vmem:[%s10] sm:$0xff]
        %v1515 = vld [vmem:[%s10 + $0x8] sm:$0xff]
        %v1516 = vld [vmem:[%s10 + $0x10] sm:$0xff]
        %v1517 = vld [vmem:[%s10 + $0x18] sm:$0xff]
        %v1518 = vld [vmem:[%s10 + $0x20] sm:$0xff]
        %v1519 = vld [vmem:[%s10 + $0x28] sm:$0xff]
        %v1520 = vld [vmem:[%s10 + $0x30] sm:$0xff]
        %v1521 = vld [vmem:[%s10 + $0x38] sm:$0xff]
        %v1522 = vld [vmem:[%s10 + $0x40] sm:$0xff]
        %v1523 = vld [vmem:[%s10 + $0x48] sm:$0xff]
        %v1524 = vld [vmem:[%s10 + $0x50] sm:$0xff]
        %v1525 = vld [vmem:[%s10 + $0x58] sm:$0xff]
        %v1526 = vld [vmem:[%s10 + $0x60] sm:$0xff]
        %v1527 = vld [vmem:[%s10 + $0x68] sm:$0xff]
        %v1528 = vld [vmem:[%s10 + $0x70] sm:$0xff]
        %v1529 = vld [vmem:[%s10 + $0x78] sm:$0xff]
        %1530 = vmatprep.subr.mxu0 0.0
        %1531 = vmatpush1.msra.mxu0 %v1514
        %1532 = vmatprep.subr.mxu0 0.0
        %1533 = vmatpush1.msra.mxu0 %v1515
        %1534 = vmatprep.subr.mxu0 0.0
        %1535 = vmatpush1.msra.mxu0 %v1516
        %1536 = vmatprep.subr.mxu0 0.0
        %1537 = vmatpush1.msra.mxu0 %v1517
        %1538 = vmatprep.subr.mxu0 0.0
        %1539 = vmatpush1.msra.mxu0 %v1518
        %1540 = vmatprep.subr.mxu0 0.0
        %1541 = vmatpush1.msra.mxu0 %v1519
        %1542 = vmatprep.subr.mxu0 0.0
        %1543 = vmatpush1.msra.mxu0 %v1520
        %1544 = vmatprep.subr.mxu0 0.0
        %1545 = vmatpush1.msra.mxu0 %v1521
        %1546 = vmatprep.subr.mxu0 0.0
        %1547 = vmatpush1.msra.mxu0 %v1522
        %1548 = vmatprep.subr.mxu0 0.0
        %1549 = vmatpush1.msra.mxu0 %v1523
        %1550 = vmatprep.subr.mxu0 0.0
        %1551 = vmatpush1.msra.mxu0 %v1524
        %1552 = vmatprep.subr.mxu0 0.0
        %1553 = vmatpush1.msra.mxu0 %v1525
        %1554 = vmatprep.subr.mxu0 0.0
        %1555 = vmatpush1.msra.mxu0 %v1526
        %1556 = vmatprep.subr.mxu0 0.0
        %1557 = vmatpush1.msra.mxu0 %v1527
        %1558 = vmatprep.subr.mxu0 0.0
        %1559 = vmatpush1.msra.mxu0 %v1528
        %1560 = vmatprep.subr.mxu0 0.0
        %1561 = vmatpush1.msra.mxu0 %v1529
        %1562 = vmatprep.subr.mxu0 0.0
        %1563 = vmatpush1.msra.mxu0 0.0
        %1564 = vmatprep.subr.mxu0 0.0
        %1565 = vmatpush1.msra.mxu0 0.0
        %1566 = vmatprep.subr.mxu0 0.0
        %1567 = vmatpush1.msra.mxu0 0.0
        %1568 = vmatprep.subr.mxu0 0.0
        %1569 = vmatpush1.msra.mxu0 0.0
        %1570 = vmatprep.subr.mxu0 0.0
        %1571 = vmatpush1.msra.mxu0 0.0
        %1572 = vmatprep.subr.mxu0 0.0
        %1573 = vmatpush1.msra.mxu0 0.0
        %1574 = vmatprep.subr.mxu0 0.0
        %1575 = vmatpush1.msra.mxu0 0.0
        %1576 = vmatprep.subr.mxu0 0.0
        %1577 = vmatpush1.msra.mxu0 0.0
        %1578 = vmatprep.subr.mxu0 0.0
        %1579 = vmatpush1.msra.mxu0 0.0
        %1580 = vmatprep.subr.mxu0 0.0
        %1581 = vmatpush1.msra.mxu0 0.0
        %1582 = vmatprep.subr.mxu0 0.0
        %1583 = vmatpush1.msra.mxu0 0.0
        %1584 = vmatprep.subr.mxu0 0.0
        %1585 = vmatpush1.msra.mxu0 0.0
        %1586 = vmatprep.subr.mxu0 0.0
        %1587 = vmatpush1.msra.mxu0 0.0
        %1588 = vmatprep.subr.mxu0 0.0
        %1589 = vmatpush1.msra.mxu0 0.0
        %1590 = vmatprep.subr.mxu0 0.0
        %1591 = vmatpush1.msra.mxu0 0.0
        %1592 = vmatprep.subr.mxu0 0.0
        %1593 = vmatpush1.msra.mxu0 0.0
        %1594 = vmatprep.mubr.f32.mxu0 0.0
        %1595 = vmatmul.mubr.f32.gmra.mrb[0].mxu0 %v1512
        %v1596 = vpop.f32.mrb[0].mxu0
        %v1597 = vadd.f32 0.0, %v1596
        %v1598 = vpop.f32.mrb[0].mxu0
        %1599 = vdwg.mxu0
        %v1600 = vadd.f32 %v1513, %v1597
        %s1601 = scalar_lea.vmem %s10, 128
        %v1602 = vld [vmem:[%s1601] sm:$0xff]
        %v1603 = vld [vmem:[%s1601 + $0x8] sm:$0xff]
        %v1604 = vld [vmem:[%s1601 + $0x10] sm:$0xff]
        %v1605 = vld [vmem:[%s1601 + $0x18] sm:$0xff]
        %v1606 = vld [vmem:[%s1601 + $0x20] sm:$0xff]
        %v1607 = vld [vmem:[%s1601 + $0x28] sm:$0xff]
        %v1608 = vld [vmem:[%s1601 + $0x30] sm:$0xff]
        %v1609 = vld [vmem:[%s1601 + $0x38] sm:$0xff]
        %v1610 = vld [vmem:[%s1601 + $0x40] sm:$0xff]
        %v1611 = vld [vmem:[%s1601 + $0x48] sm:$0xff]
        %v1612 = vld [vmem:[%s1601 + $0x50] sm:$0xff]
        %v1613 = vld [vmem:[%s1601 + $0x58] sm:$0xff]
        %v1614 = vld [vmem:[%s1601 + $0x60] sm:$0xff]
        %v1615 = vld [vmem:[%s1601 + $0x68] sm:$0xff]
        %v1616 = vld [vmem:[%s1601 + $0x70] sm:$0xff]
        %v1617 = vld [vmem:[%s1601 + $0x78] sm:$0xff]
        %v1619 = vrot.slane %v1512, 1
        %1621 = vmatprep.subr.mxu0 0.0
        %1622 = vmatpush1.msra.mxu0 %v1602
        %1623 = vmatprep.subr.mxu0 0.0
        %1624 = vmatpush1.msra.mxu0 %v1603
        %1625 = vmatprep.subr.mxu0 0.0
        %1626 = vmatpush1.msra.mxu0 %v1604
        %1627 = vmatprep.subr.mxu0 0.0
        %1628 = vmatpush1.msra.mxu0 %v1605
        %1629 = vmatprep.subr.mxu0 0.0
        %1630 = vmatpush1.msra.mxu0 %v1606
        %1631 = vmatprep.subr.mxu0 0.0
        %1632 = vmatpush1.msra.mxu0 %v1607
        %1633 = vmatprep.subr.mxu0 0.0
        %1634 = vmatpush1.msra.mxu0 %v1608
        %1635 = vmatprep.subr.mxu0 0.0
        %1636 = vmatpush1.msra.mxu0 %v1609
        %1637 = vmatprep.subr.mxu0 0.0
        %1638 = vmatpush1.msra.mxu0 %v1610
        %1639 = vmatprep.subr.mxu0 0.0
        %1640 = vmatpush1.msra.mxu0 %v1611
        %1641 = vmatprep.subr.mxu0 0.0
        %1642 = vmatpush1.msra.mxu0 %v1612
        %1643 = vmatprep.subr.mxu0 0.0
        %1644 = vmatpush1.msra.mxu0 %v1613
        %1645 = vmatprep.subr.mxu0 0.0
        %1646 = vmatpush1.msra.mxu0 %v1614
        %1647 = vmatprep.subr.mxu0 0.0
        %1648 = vmatpush1.msra.mxu0 %v1615
        %1649 = vmatprep.subr.mxu0 0.0
        %1650 = vmatpush1.msra.mxu0 %v1616
        %1651 = vmatprep.subr.mxu0 0.0
        %1652 = vmatpush1.msra.mxu0 %v1617
        %1653 = vmatprep.subr.mxu0 0.0
        %1654 = vmatpush1.msra.mxu0 0.0
        %1655 = vmatprep.subr.mxu0 0.0
        %1656 = vmatpush1.msra.mxu0 0.0
        %1657 = vmatprep.subr.mxu0 0.0
        %1658 = vmatpush1.msra.mxu0 0.0
        %1659 = vmatprep.subr.mxu0 0.0
        %1660 = vmatpush1.msra.mxu0 0.0
        %1661 = vmatprep.subr.mxu0 0.0
        %1662 = vmatpush1.msra.mxu0 0.0
        %1663 = vmatprep.subr.mxu0 0.0
        %1664 = vmatpush1.msra.mxu0 0.0
        %1665 = vmatprep.subr.mxu0 0.0
        %1666 = vmatpush1.msra.mxu0 0.0
        %1667 = vmatprep.subr.mxu0 0.0
        %1668 = vmatpush1.msra.mxu0 0.0
        %1669 = vmatprep.subr.mxu0 0.0
        %1670 = vmatpush1.msra.mxu0 0.0
        %1671 = vmatprep.subr.mxu0 0.0
        %1672 = vmatpush1.msra.mxu0 0.0
        %1673 = vmatprep.subr.mxu0 0.0
        %1674 = vmatpush1.msra.mxu0 0.0
        %1675 = vmatprep.subr.mxu0 0.0
        %1676 = vmatpush1.msra.mxu0 0.0
        %1677 = vmatprep.subr.mxu0 0.0
        %1678 = vmatpush1.msra.mxu0 0.0
        %1679 = vmatprep.subr.mxu0 0.0
        %1680 = vmatpush1.msra.mxu0 0.0
        %1681 = vmatprep.subr.mxu0 0.0
        %1682 = vmatpush1.msra.mxu0 0.0
        %1683 = vmatprep.subr.mxu0 0.0
        %1684 = vmatpush1.msra.mxu0 0.0
        %1685 = vmatprep.mubr.f32.mxu0 0.0
        %1686 = vmatmul.mubr.f32.gmra.mrb[0].mxu0 %v1619
        %v1687 = vpop.f32.mrb[0].mxu0
        %v1688 = vadd.f32 0.0, %v1687
        %v1689 = vpop.f32.mrb[0].mxu0
        %1690 = vdwg.mxu0
        %v1691 = vadd.f32 %v1600, %v1688
        %s1692 = scalar_lea.vmem %s10, 256
        %v1693 = vld [vmem:[%s1692] sm:$0xff]
        %v1694 = vld [vmem:[%s1692 + $0x8] sm:$0xff]
        %v1695 = vld [vmem:[%s1692 + $0x10] sm:$0xff]
        %v1696 = vld [vmem:[%s1692 + $0x18] sm:$0xff]
        %v1697 = vld [vmem:[%s1692 + $0x20] sm:$0xff]
        %v1698 = vld [vmem:[%s1692 + $0x28] sm:$0xff]
        %v1699 = vld [vmem:[%s1692 + $0x30] sm:$0xff]
        %v1700 = vld [vmem:[%s1692 + $0x38] sm:$0xff]
        %v1701 = vld [vmem:[%s1692 + $0x40] sm:$0xff]
        %v1702 = vld [vmem:[%s1692 + $0x48] sm:$0xff]
        %v1703 = vld [vmem:[%s1692 + $0x50] sm:$0xff]
        %v1704 = vld [vmem:[%s1692 + $0x58] sm:$0xff]
        %v1705 = vld [vmem:[%s1692 + $0x60] sm:$0xff]
        %v1706 = vld [vmem:[%s1692 + $0x68] sm:$0xff]
        %v1707 = vld [vmem:[%s1692 + $0x70] sm:$0xff]
        %v1708 = vld [vmem:[%s1692 + $0x78] sm:$0xff]
        %v1709 = vrot.slane %v1512, 2
        %1711 = vmatprep.subr.mxu0 0.0
        %1712 = vmatpush1.msra.mxu0 %v1693
        %1713 = vmatprep.subr.mxu0 0.0
        %1714 = vmatpush1.msra.mxu0 %v1694
        %1715 = vmatprep.subr.mxu0 0.0
        %1716 = vmatpush1.msra.mxu0 %v1695
        %1717 = vmatprep.subr.mxu0 0.0
        %1718 = vmatpush1.msra.mxu0 %v1696
        %1719 = vmatprep.subr.mxu0 0.0
        %1720 = vmatpush1.msra.mxu0 %v1697
        %1721 = vmatprep.subr.mxu0 0.0
        %1722 = vmatpush1.msra.mxu0 %v1698
        %1723 = vmatprep.subr.mxu0 0.0
        %1724 = vmatpush1.msra.mxu0 %v1699
        %1725 = vmatprep.subr.mxu0 0.0
        %1726 = vmatpush1.msra.mxu0 %v1700
        %1727 = vmatprep.subr.mxu0 0.0
        %1728 = vmatpush1.msra.mxu0 %v1701
        %1729 = vmatprep.subr.mxu0 0.0
        %1730 = vmatpush1.msra.mxu0 %v1702
        %1731 = vmatprep.subr.mxu0 0.0
        %1732 = vmatpush1.msra.mxu0 %v1703
        %1733 = vmatprep.subr.mxu0 0.0
        %1734 = vmatpush1.msra.mxu0 %v1704
        %1735 = vmatprep.subr.mxu0 0.0
        %1736 = vmatpush1.msra.mxu0 %v1705
        %1737 = vmatprep.subr.mxu0 0.0
        %1738 = vmatpush1.msra.mxu0 %v1706
        %1739 = vmatprep.subr.mxu0 0.0
        %1740 = vmatpush1.msra.mxu0 %v1707
        %1741 = vmatprep.subr.mxu0 0.0
        %1742 = vmatpush1.msra.mxu0 %v1708
        %1743 = vmatprep.subr.mxu0 0.0
        %1744 = vmatpush1.msra.mxu0 0.0
        %1745 = vmatprep.subr.mxu0 0.0
        %1746 = vmatpush1.msra.mxu0 0.0
        %1747 = vmatprep.subr.mxu0 0.0
        %1748 = vmatpush1.msra.mxu0 0.0
        %1749 = vmatprep.subr.mxu0 0.0
        %1750 = vmatpush1.msra.mxu0 0.0
        %1751 = vmatprep.subr.mxu0 0.0
        %1752 = vmatpush1.msra.mxu0 0.0
        %1753 = vmatprep.subr.mxu0 0.0
        %1754 = vmatpush1.msra.mxu0 0.0
        %1755 = vmatprep.subr.mxu0 0.0
        %1756 = vmatpush1.msra.mxu0 0.0
        %1757 = vmatprep.subr.mxu0 0.0
        %1758 = vmatpush1.msra.mxu0 0.0
        %1759 = vmatprep.subr.mxu0 0.0
        %1760 = vmatpush1.msra.mxu0 0.0
        %1761 = vmatprep.subr.mxu0 0.0
        %1762 = vmatpush1.msra.mxu0 0.0
        %1763 = vmatprep.subr.mxu0 0.0
        %1764 = vmatpush1.msra.mxu0 0.0
        %1765 = vmatprep.subr.mxu0 0.0
        %1766 = vmatpush1.msra.mxu0 0.0
        %1767 = vmatprep.subr.mxu0 0.0
        %1768 = vmatpush1.msra.mxu0 0.0
        %1769 = vmatprep.subr.mxu0 0.0
        %1770 = vmatpush1.msra.mxu0 0.0
        %1771 = vmatprep.subr.mxu0 0.0
        %1772 = vmatpush1.msra.mxu0 0.0
        %1773 = vmatprep.subr.mxu0 0.0
        %1774 = vmatpush1.msra.mxu0 0.0
        %1775 = vmatprep.mubr.f32.mxu0 0.0
        %1776 = vmatmul.mubr.f32.gmra.mrb[0].mxu0 %v1709
        %v1777 = vpop.f32.mrb[0].mxu0
        %v1778 = vadd.f32 0.0, %v1777
        %v1779 = vpop.f32.mrb[0].mxu0
        %1780 = vdwg.mxu0
        %v1781 = vadd.f32 %v1691, %v1778
        %s1782 = scalar_lea.vmem %s10, 384
        %v1783 = vld [vmem:[%s1782] sm:$0xff]
        %v1784 = vld [vmem:[%s1782 + $0x8] sm:$0xff]
        %v1785 = vld [vmem:[%s1782 + $0x10] sm:$0xff]
        %v1786 = vld [vmem:[%s1782 + $0x18] sm:$0xff]
        %v1787 = vld [vmem:[%s1782 + $0x20] sm:$0xff]
        %v1788 = vld [vmem:[%s1782 + $0x28] sm:$0xff]
        %v1789 = vld [vmem:[%s1782 + $0x30] sm:$0xff]
        %v1790 = vld [vmem:[%s1782 + $0x38] sm:$0xff]
        %v1791 = vld [vmem:[%s1782 + $0x40] sm:$0xff]
        %v1792 = vld [vmem:[%s1782 + $0x48] sm:$0xff]
        %v1793 = vld [vmem:[%s1782 + $0x50] sm:$0xff]
        %v1794 = vld [vmem:[%s1782 + $0x58] sm:$0xff]
        %v1795 = vld [vmem:[%s1782 + $0x60] sm:$0xff]
        %v1796 = vld [vmem:[%s1782 + $0x68] sm:$0xff]
        %v1797 = vld [vmem:[%s1782 + $0x70] sm:$0xff]
        %v1798 = vld [vmem:[%s1782 + $0x78] sm:$0xff]
        %v1799 = vrot.slane %v1512, 3
        %1801 = vmatprep.subr.mxu0 0.0
        %1802 = vmatpush1.msra.mxu0 %v1783
        %1803 = vmatprep.subr.mxu0 0.0
        %1804 = vmatpush1.msra.mxu0 %v1784
        %1805 = vmatprep.subr.mxu0 0.0
        %1806 = vmatpush1.msra.mxu0 %v1785
        %1807 = vmatprep.subr.mxu0 0.0
        %1808 = vmatpush1.msra.mxu0 %v1786
        %1809 = vmatprep.subr.mxu0 0.0
        %1810 = vmatpush1.msra.mxu0 %v1787
        %1811 = vmatprep.subr.mxu0 0.0
        %1812 = vmatpush1.msra.mxu0 %v1788
        %1813 = vmatprep.subr.mxu0 0.0
        %1814 = vmatpush1.msra.mxu0 %v1789
        %1815 = vmatprep.subr.mxu0 0.0
        %1816 = vmatpush1.msra.mxu0 %v1790
        %1817 = vmatprep.subr.mxu0 0.0
        %1818 = vmatpush1.msra.mxu0 %v1791
        %1819 = vmatprep.subr.mxu0 0.0
        %1820 = vmatpush1.msra.mxu0 %v1792
        %1821 = vmatprep.subr.mxu0 0.0
        %1822 = vmatpush1.msra.mxu0 %v1793
        %1823 = vmatprep.subr.mxu0 0.0
        %1824 = vmatpush1.msra.mxu0 %v1794
        %1825 = vmatprep.subr.mxu0 0.0
        %1826 = vmatpush1.msra.mxu0 %v1795
        %1827 = vmatprep.subr.mxu0 0.0
        %1828 = vmatpush1.msra.mxu0 %v1796
        %1829 = vmatprep.subr.mxu0 0.0
        %1830 = vmatpush1.msra.mxu0 %v1797
        %1831 = vmatprep.subr.mxu0 0.0
        %1832 = vmatpush1.msra.mxu0 %v1798
        %1833 = vmatprep.subr.mxu0 0.0
        %1834 = vmatpush1.msra.mxu0 0.0
        %1835 = vmatprep.subr.mxu0 0.0
        %1836 = vmatpush1.msra.mxu0 0.0
        %1837 = vmatprep.subr.mxu0 0.0
        %1838 = vmatpush1.msra.mxu0 0.0
        %1839 = vmatprep.subr.mxu0 0.0
        %1840 = vmatpush1.msra.mxu0 0.0
        %1841 = vmatprep.subr.mxu0 0.0
        %1842 = vmatpush1.msra.mxu0 0.0
        %1843 = vmatprep.subr.mxu0 0.0
        %1844 = vmatpush1.msra.mxu0 0.0
        %1845 = vmatprep.subr.mxu0 0.0
        %1846 = vmatpush1.msra.mxu0 0.0
        %1847 = vmatprep.subr.mxu0 0.0
        %1848 = vmatpush1.msra.mxu0 0.0
        %1849 = vmatprep.subr.mxu0 0.0
        %1850 = vmatpush1.msra.mxu0 0.0
        %1851 = vmatprep.subr.mxu0 0.0
        %1852 = vmatpush1.msra.mxu0 0.0
        %1853 = vmatprep.subr.mxu0 0.0
        %1854 = vmatpush1.msra.mxu0 0.0
        %1855 = vmatprep.subr.mxu0 0.0
        %1856 = vmatpush1.msra.mxu0 0.0
        %1857 = vmatprep.subr.mxu0 0.0
        %1858 = vmatpush1.msra.mxu0 0.0
        %1859 = vmatprep.subr.mxu0 0.0
        %1860 = vmatpush1.msra.mxu0 0.0
        %1861 = vmatprep.subr.mxu0 0.0
        %1862 = vmatpush1.msra.mxu0 0.0
        %1863 = vmatprep.subr.mxu0 0.0
        %1864 = vmatpush1.msra.mxu0 0.0
        %1865 = vmatprep.mubr.f32.mxu0 0.0
        %1866 = vmatmul.mubr.f32.gmra.mrb[0].mxu0 %v1799
        %v1867 = vpop.f32.mrb[0].mxu0
        %v1868 = vadd.f32 0.0, %v1867
        %v1869 = vpop.f32.mrb[0].mxu0
        %1870 = vdwg.mxu0
        %v1871 = vadd.f32 %v1781, %v1868
        %s1872 = scalar_lea.vmem %s10, 512
        %v1873 = vld [vmem:[%s1872] sm:$0xff]
        %v1874 = vld [vmem:[%s1872 + $0x8] sm:$0xff]
        %v1875 = vld [vmem:[%s1872 + $0x10] sm:$0xff]
        %v1876 = vld [vmem:[%s1872 + $0x18] sm:$0xff]
        %v1877 = vld [vmem:[%s1872 + $0x20] sm:$0xff]
        %v1878 = vld [vmem:[%s1872 + $0x28] sm:$0xff]
        %v1879 = vld [vmem:[%s1872 + $0x30] sm:$0xff]
        %v1880 = vld [vmem:[%s1872 + $0x38] sm:$0xff]
        %v1881 = vld [vmem:[%s1872 + $0x40] sm:$0xff]
        %v1882 = vld [vmem:[%s1872 + $0x48] sm:$0xff]
        %v1883 = vld [vmem:[%s1872 + $0x50] sm:$0xff]
        %v1884 = vld [vmem:[%s1872 + $0x58] sm:$0xff]
        %v1885 = vld [vmem:[%s1872 + $0x60] sm:$0xff]
        %v1886 = vld [vmem:[%s1872 + $0x68] sm:$0xff]
        %v1887 = vld [vmem:[%s1872 + $0x70] sm:$0xff]
        %v1888 = vld [vmem:[%s1872 + $0x78] sm:$0xff]
        %v1889 = vrot.slane %v1512, 4
        %1891 = vmatprep.subr.mxu0 0.0
        %1892 = vmatpush1.msra.mxu0 %v1873
        %1893 = vmatprep.subr.mxu0 0.0
        %1894 = vmatpush1.msra.mxu0 %v1874
        %1895 = vmatprep.subr.mxu0 0.0
        %1896 = vmatpush1.msra.mxu0 %v1875
        %1897 = vmatprep.subr.mxu0 0.0
        %1898 = vmatpush1.msra.mxu0 %v1876
        %1899 = vmatprep.subr.mxu0 0.0
        %1900 = vmatpush1.msra.mxu0 %v1877
        %1901 = vmatprep.subr.mxu0 0.0
        %1902 = vmatpush1.msra.mxu0 %v1878
        %1903 = vmatprep.subr.mxu0 0.0
        %1904 = vmatpush1.msra.mxu0 %v1879
        %1905 = vmatprep.subr.mxu0 0.0
        %1906 = vmatpush1.msra.mxu0 %v1880
        %1907 = vmatprep.subr.mxu0 0.0
        %1908 = vmatpush1.msra.mxu0 %v1881
        %1909 = vmatprep.subr.mxu0 0.0
        %1910 = vmatpush1.msra.mxu0 %v1882
        %1911 = vmatprep.subr.mxu0 0.0
        %1912 = vmatpush1.msra.mxu0 %v1883
        %1913 = vmatprep.subr.mxu0 0.0
        %1914 = vmatpush1.msra.mxu0 %v1884
        %1915 = vmatprep.subr.mxu0 0.0
        %1916 = vmatpush1.msra.mxu0 %v1885
        %1917 = vmatprep.subr.mxu0 0.0
        %1918 = vmatpush1.msra.mxu0 %v1886
        %1919 = vmatprep.subr.mxu0 0.0
        %1920 = vmatpush1.msra.mxu0 %v1887
        %1921 = vmatprep.subr.mxu0 0.0
        %1922 = vmatpush1.msra.mxu0 %v1888
        %1923 = vmatprep.subr.mxu0 0.0
        %1924 = vmatpush1.msra.mxu0 0.0
        %1925 = vmatprep.subr.mxu0 0.0
        %1926 = vmatpush1.msra.mxu0 0.0
        %1927 = vmatprep.subr.mxu0 0.0
        %1928 = vmatpush1.msra.mxu0 0.0
        %1929 = vmatprep.subr.mxu0 0.0
        %1930 = vmatpush1.msra.mxu0 0.0
        %1931 = vmatprep.subr.mxu0 0.0
        %1932 = vmatpush1.msra.mxu0 0.0
        %1933 = vmatprep.subr.mxu0 0.0
        %1934 = vmatpush1.msra.mxu0 0.0
        %1935 = vmatprep.subr.mxu0 0.0
        %1936 = vmatpush1.msra.mxu0 0.0
        %1937 = vmatprep.subr.mxu0 0.0
        %1938 = vmatpush1.msra.mxu0 0.0
        %1939 = vmatprep.subr.mxu0 0.0
        %1940 = vmatpush1.msra.mxu0 0.0
        %1941 = vmatprep.subr.mxu0 0.0
        %1942 = vmatpush1.msra.mxu0 0.0
        %1943 = vmatprep.subr.mxu0 0.0
        %1944 = vmatpush1.msra.mxu0 0.0
        %1945 = vmatprep.subr.mxu0 0.0
        %1946 = vmatpush1.msra.mxu0 0.0
        %1947 = vmatprep.subr.mxu0 0.0
        %1948 = vmatpush1.msra.mxu0 0.0
        %1949 = vmatprep.subr.mxu0 0.0
        %1950 = vmatpush1.msra.mxu0 0.0
        %1951 = vmatprep.subr.mxu0 0.0
        %1952 = vmatpush1.msra.mxu0 0.0
        %1953 = vmatprep.subr.mxu0 0.0
        %1954 = vmatpush1.msra.mxu0 0.0
        %1955 = vmatprep.mubr.f32.mxu0 0.0
        %1956 = vmatmul.mubr.f32.gmra.mrb[0].mxu0 %v1889
        %v1957 = vpop.f32.mrb[0].mxu0
        %v1958 = vadd.f32 0.0, %v1957
        %v1959 = vpop.f32.mrb[0].mxu0
        %1960 = vdwg.mxu0
        %v1961 = vadd.f32 %v1871, %v1958
        %s1962 = scalar_lea.vmem %s10, 640
        %v1963 = vld [vmem:[%s1962] sm:$0xff]
        %v1964 = vld [vmem:[%s1962 + $0x8] sm:$0xff]
        %v1965 = vld [vmem:[%s1962 + $0x10] sm:$0xff]
        %v1966 = vld [vmem:[%s1962 + $0x18] sm:$0xff]
        %v1967 = vld [vmem:[%s1962 + $0x20] sm:$0xff]
        %v1968 = vld [vmem:[%s1962 + $0x28] sm:$0xff]
        %v1969 = vld [vmem:[%s1962 + $0x30] sm:$0xff]
        %v1970 = vld [vmem:[%s1962 + $0x38] sm:$0xff]
        %v1971 = vld [vmem:[%s1962 + $0x40] sm:$0xff]
        %v1972 = vld [vmem:[%s1962 + $0x48] sm:$0xff]
        %v1973 = vld [vmem:[%s1962 + $0x50] sm:$0xff]
        %v1974 = vld [vmem:[%s1962 + $0x58] sm:$0xff]
        %v1975 = vld [vmem:[%s1962 + $0x60] sm:$0xff]
        %v1976 = vld [vmem:[%s1962 + $0x68] sm:$0xff]
        %v1977 = vld [vmem:[%s1962 + $0x70] sm:$0xff]
        %v1978 = vld [vmem:[%s1962 + $0x78] sm:$0xff]
        %v1979 = vrot.slane %v1512, 5
        %1981 = vmatprep.subr.mxu0 0.0
        %1982 = vmatpush1.msra.mxu0 %v1963
        %1983 = vmatprep.subr.mxu0 0.0
        %1984 = vmatpush1.msra.mxu0 %v1964
        %1985 = vmatprep.subr.mxu0 0.0
        %1986 = vmatpush1.msra.mxu0 %v1965
        %1987 = vmatprep.subr.mxu0 0.0
        %1988 = vmatpush1.msra.mxu0 %v1966
        %1989 = vmatprep.subr.mxu0 0.0
        %1990 = vmatpush1.msra.mxu0 %v1967
        %1991 = vmatprep.subr.mxu0 0.0
        %1992 = vmatpush1.msra.mxu0 %v1968
        %1993 = vmatprep.subr.mxu0 0.0
        %1994 = vmatpush1.msra.mxu0 %v1969
        %1995 = vmatprep.subr.mxu0 0.0
        %1996 = vmatpush1.msra.mxu0 %v1970
        %1997 = vmatprep.subr.mxu0 0.0
        %1998 = vmatpush1.msra.mxu0 %v1971
        %1999 = vmatprep.subr.mxu0 0.0
        %2000 = vmatpush1.msra.mxu0 %v1972
        %2001 = vmatprep.subr.mxu0 0.0
        %2002 = vmatpush1.msra.mxu0 %v1973
        %2003 = vmatprep.subr.mxu0 0.0
        %2004 = vmatpush1.msra.mxu0 %v1974
        %2005 = vmatprep.subr.mxu0 0.0
        %2006 = vmatpush1.msra.mxu0 %v1975
        %2007 = vmatprep.subr.mxu0 0.0
        %2008 = vmatpush1.msra.mxu0 %v1976
        %2009 = vmatprep.subr.mxu0 0.0
        %2010 = vmatpush1.msra.mxu0 %v1977
        %2011 = vmatprep.subr.mxu0 0.0
        %2012 = vmatpush1.msra.mxu0 %v1978
        %2013 = vmatprep.subr.mxu0 0.0
        %2014 = vmatpush1.msra.mxu0 0.0
        %2015 = vmatprep.subr.mxu0 0.0
        %2016 = vmatpush1.msra.mxu0 0.0
        %2017 = vmatprep.subr.mxu0 0.0
        %2018 = vmatpush1.msra.mxu0 0.0
        %2019 = vmatprep.subr.mxu0 0.0
        %2020 = vmatpush1.msra.mxu0 0.0
        %2021 = vmatprep.subr.mxu0 0.0
        %2022 = vmatpush1.msra.mxu0 0.0
        %2023 = vmatprep.subr.mxu0 0.0
        %2024 = vmatpush1.msra.mxu0 0.0
        %2025 = vmatprep.subr.mxu0 0.0
        %2026 = vmatpush1.msra.mxu0 0.0
        %2027 = vmatprep.subr.mxu0 0.0
        %2028 = vmatpush1.msra.mxu0 0.0
        %2029 = vmatprep.subr.mxu0 0.0
        %2030 = vmatpush1.msra.mxu0 0.0
        %2031 = vmatprep.subr.mxu0 0.0
        %2032 = vmatpush1.msra.mxu0 0.0
        %2033 = vmatprep.subr.mxu0 0.0
        %2034 = vmatpush1.msra.mxu0 0.0
        %2035 = vmatprep.subr.mxu0 0.0
        %2036 = vmatpush1.msra.mxu0 0.0
        %2037 = vmatprep.subr.mxu0 0.0
        %2038 = vmatpush1.msra.mxu0 0.0
        %2039 = vmatprep.subr.mxu0 0.0
        %2040 = vmatpush1.msra.mxu0 0.0
        %2041 = vmatprep.subr.mxu0 0.0
        %2042 = vmatpush1.msra.mxu0 0.0
        %2043 = vmatprep.subr.mxu0 0.0
        %2044 = vmatpush1.msra.mxu0 0.0
        %2045 = vmatprep.mubr.f32.mxu0 0.0
        %2046 = vmatmul.mubr.f32.gmra.mrb[0].mxu0 %v1979
        %v2047 = vpop.f32.mrb[0].mxu0
        %v2048 = vadd.f32 0.0, %v2047
        %v2049 = vpop.f32.mrb[0].mxu0
        %2050 = vdwg.mxu0
        %v2051 = vadd.f32 %v1961, %v2048
        %s2052 = scalar_lea.vmem %s10, 768
        %v2053 = vld [vmem:[%s2052] sm:$0xff]
        %v2054 = vld [vmem:[%s2052 + $0x8] sm:$0xff]
        %v2055 = vld [vmem:[%s2052 + $0x10] sm:$0xff]
        %v2056 = vld [vmem:[%s2052 + $0x18] sm:$0xff]
        %v2057 = vld [vmem:[%s2052 + $0x20] sm:$0xff]
        %v2058 = vld [vmem:[%s2052 + $0x28] sm:$0xff]
        %v2059 = vld [vmem:[%s2052 + $0x30] sm:$0xff]
        %v2060 = vld [vmem:[%s2052 + $0x38] sm:$0xff]
        %v2061 = vld [vmem:[%s2052 + $0x40] sm:$0xff]
        %v2062 = vld [vmem:[%s2052 + $0x48] sm:$0xff]
        %v2063 = vld [vmem:[%s2052 + $0x50] sm:$0xff]
        %v2064 = vld [vmem:[%s2052 + $0x58] sm:$0xff]
        %v2065 = vld [vmem:[%s2052 + $0x60] sm:$0xff]
        %v2066 = vld [vmem:[%s2052 + $0x68] sm:$0xff]
        %v2067 = vld [vmem:[%s2052 + $0x70] sm:$0xff]
        %v2068 = vld [vmem:[%s2052 + $0x78] sm:$0xff]
        %v2069 = vrot.slane %v1512, 6
        %2071 = vmatprep.subr.mxu0 0.0
        %2072 = vmatpush1.msra.mxu0 %v2053
        %2073 = vmatprep.subr.mxu0 0.0
        %2074 = vmatpush1.msra.mxu0 %v2054
        %2075 = vmatprep.subr.mxu0 0.0
        %2076 = vmatpush1.msra.mxu0 %v2055
        %2077 = vmatprep.subr.mxu0 0.0
        %2078 = vmatpush1.msra.mxu0 %v2056
        %2079 = vmatprep.subr.mxu0 0.0
        %2080 = vmatpush1.msra.mxu0 %v2057
        %2081 = vmatprep.subr.mxu0 0.0
        %2082 = vmatpush1.msra.mxu0 %v2058
        %2083 = vmatprep.subr.mxu0 0.0
        %2084 = vmatpush1.msra.mxu0 %v2059
        %2085 = vmatprep.subr.mxu0 0.0
        %2086 = vmatpush1.msra.mxu0 %v2060
        %2087 = vmatprep.subr.mxu0 0.0
        %2088 = vmatpush1.msra.mxu0 %v2061
        %2089 = vmatprep.subr.mxu0 0.0
        %2090 = vmatpush1.msra.mxu0 %v2062
        %2091 = vmatprep.subr.mxu0 0.0
        %2092 = vmatpush1.msra.mxu0 %v2063
        %2093 = vmatprep.subr.mxu0 0.0
        %2094 = vmatpush1.msra.mxu0 %v2064
        %2095 = vmatprep.subr.mxu0 0.0
        %2096 = vmatpush1.msra.mxu0 %v2065
        %2097 = vmatprep.subr.mxu0 0.0
        %2098 = vmatpush1.msra.mxu0 %v2066
        %2099 = vmatprep.subr.mxu0 0.0
        %2100 = vmatpush1.msra.mxu0 %v2067
        %2101 = vmatprep.subr.mxu0 0.0
        %2102 = vmatpush1.msra.mxu0 %v2068
        %2103 = vmatprep.subr.mxu0 0.0
        %2104 = vmatpush1.msra.mxu0 0.0
        %2105 = vmatprep.subr.mxu0 0.0
        %2106 = vmatpush1.msra.mxu0 0.0
        %2107 = vmatprep.subr.mxu0 0.0
        %2108 = vmatpush1.msra.mxu0 0.0
        %2109 = vmatprep.subr.mxu0 0.0
        %2110 = vmatpush1.msra.mxu0 0.0
        %2111 = vmatprep.subr.mxu0 0.0
        %2112 = vmatpush1.msra.mxu0 0.0
        %2113 = vmatprep.subr.mxu0 0.0
        %2114 = vmatpush1.msra.mxu0 0.0
        %2115 = vmatprep.subr.mxu0 0.0
        %2116 = vmatpush1.msra.mxu0 0.0
        %2117 = vmatprep.subr.mxu0 0.0
        %2118 = vmatpush1.msra.mxu0 0.0
        %2119 = vmatprep.subr.mxu0 0.0
        %2120 = vmatpush1.msra.mxu0 0.0
        %2121 = vmatprep.subr.mxu0 0.0
        %2122 = vmatpush1.msra.mxu0 0.0
        %2123 = vmatprep.subr.mxu0 0.0
        %2124 = vmatpush1.msra.mxu0 0.0
        %2125 = vmatprep.subr.mxu0 0.0
        %2126 = vmatpush1.msra.mxu0 0.0
        %2127 = vmatprep.subr.mxu0 0.0
        %2128 = vmatpush1.msra.mxu0 0.0
        %2129 = vmatprep.subr.mxu0 0.0
        %2130 = vmatpush1.msra.mxu0 0.0
        %2131 = vmatprep.subr.mxu0 0.0
        %2132 = vmatpush1.msra.mxu0 0.0
        %2133 = vmatprep.subr.mxu0 0.0
        %2134 = vmatpush1.msra.mxu0 0.0
        %2135 = vmatprep.mubr.f32.mxu0 0.0
        %2136 = vmatmul.mubr.f32.gmra.mrb[0].mxu0 %v2069
        %v2137 = vpop.f32.mrb[0].mxu0
        %v2138 = vadd.f32 0.0, %v2137
        %v2139 = vpop.f32.mrb[0].mxu0
        %2140 = vdwg.mxu0
        %v2141 = vadd.f32 %v2051, %v2138
        %s2142 = scalar_lea.vmem %s10, 896
        %v2143 = vld [vmem:[%s2142] sm:$0xff]
        %v2144 = vld [vmem:[%s2142 + $0x8] sm:$0xff]
        %v2145 = vld [vmem:[%s2142 + $0x10] sm:$0xff]
        %v2146 = vld [vmem:[%s2142 + $0x18] sm:$0xff]
        %v2147 = vld [vmem:[%s2142 + $0x20] sm:$0xff]
        %v2148 = vld [vmem:[%s2142 + $0x28] sm:$0xff]
        %v2149 = vld [vmem:[%s2142 + $0x30] sm:$0xff]
        %v2150 = vld [vmem:[%s2142 + $0x38] sm:$0xff]
        %v2151 = vld [vmem:[%s2142 + $0x40] sm:$0xff]
        %v2152 = vld [vmem:[%s2142 + $0x48] sm:$0xff]
        %v2153 = vld [vmem:[%s2142 + $0x50] sm:$0xff]
        %v2154 = vld [vmem:[%s2142 + $0x58] sm:$0xff]
        %v2155 = vld [vmem:[%s2142 + $0x60] sm:$0xff]
        %v2156 = vld [vmem:[%s2142 + $0x68] sm:$0xff]
        %v2157 = vld [vmem:[%s2142 + $0x70] sm:$0xff]
        %v2158 = vld [vmem:[%s2142 + $0x78] sm:$0xff]
        %v2159 = vrot.slane %v1512, 7
        %2161 = vmatprep.subr.mxu0 0.0
        %2162 = vmatpush1.msra.mxu0 %v2143
        %2163 = vmatprep.subr.mxu0 0.0
        %2164 = vmatpush1.msra.mxu0 %v2144
        %2165 = vmatprep.subr.mxu0 0.0
        %2166 = vmatpush1.msra.mxu0 %v2145
        %2167 = vmatprep.subr.mxu0 0.0
        %2168 = vmatpush1.msra.mxu0 %v2146
        %2169 = vmatprep.subr.mxu0 0.0
        %2170 = vmatpush1.msra.mxu0 %v2147
        %2171 = vmatprep.subr.mxu0 0.0
        %2172 = vmatpush1.msra.mxu0 %v2148
        %2173 = vmatprep.subr.mxu0 0.0
        %2174 = vmatpush1.msra.mxu0 %v2149
        %2175 = vmatprep.subr.mxu0 0.0
        %2176 = vmatpush1.msra.mxu0 %v2150
        %2177 = vmatprep.subr.mxu0 0.0
        %2178 = vmatpush1.msra.mxu0 %v2151
        %2179 = vmatprep.subr.mxu0 0.0
        %2180 = vmatpush1.msra.mxu0 %v2152
        %2181 = vmatprep.subr.mxu0 0.0
        %2182 = vmatpush1.msra.mxu0 %v2153
        %2183 = vmatprep.subr.mxu0 0.0
        %2184 = vmatpush1.msra.mxu0 %v2154
        %2185 = vmatprep.subr.mxu0 0.0
        %2186 = vmatpush1.msra.mxu0 %v2155
        %2187 = vmatprep.subr.mxu0 0.0
        %2188 = vmatpush1.msra.mxu0 %v2156
        %2189 = vmatprep.subr.mxu0 0.0
        %2190 = vmatpush1.msra.mxu0 %v2157
        %2191 = vmatprep.subr.mxu0 0.0
        %2192 = vmatpush1.msra.mxu0 %v2158
        %2193 = vmatprep.subr.mxu0 0.0
        %2194 = vmatpush1.msra.mxu0 0.0
        %2195 = vmatprep.subr.mxu0 0.0
        %2196 = vmatpush1.msra.mxu0 0.0
        %2197 = vmatprep.subr.mxu0 0.0
        %2198 = vmatpush1.msra.mxu0 0.0
        %2199 = vmatprep.subr.mxu0 0.0
        %2200 = vmatpush1.msra.mxu0 0.0
        %2201 = vmatprep.subr.mxu0 0.0
        %2202 = vmatpush1.msra.mxu0 0.0
        %2203 = vmatprep.subr.mxu0 0.0
        %2204 = vmatpush1.msra.mxu0 0.0
        %2205 = vmatprep.subr.mxu0 0.0
        %2206 = vmatpush1.msra.mxu0 0.0
        %2207 = vmatprep.subr.mxu0 0.0
        %2208 = vmatpush1.msra.mxu0 0.0
        %2209 = vmatprep.subr.mxu0 0.0
        %2210 = vmatpush1.msra.mxu0 0.0
        %2211 = vmatprep.subr.mxu0 0.0
        %2212 = vmatpush1.msra.mxu0 0.0
        %2213 = vmatprep.subr.mxu0 0.0
        %2214 = vmatpush1.msra.mxu0 0.0
        %2215 = vmatprep.subr.mxu0 0.0
        %2216 = vmatpush1.msra.mxu0 0.0
        %2217 = vmatprep.subr.mxu0 0.0
        %2218 = vmatpush1.msra.mxu0 0.0
        %2219 = vmatprep.subr.mxu0 0.0
        %2220 = vmatpush1.msra.mxu0 0.0
        %2221 = vmatprep.subr.mxu0 0.0
        %2222 = vmatpush1.msra.mxu0 0.0
        %2223 = vmatprep.subr.mxu0 0.0
        %2224 = vmatpush1.msra.mxu0 0.0
        %2225 = vmatprep.mubr.f32.mxu0 0.0
        %2226 = vmatmul.mubr.f32.gmra.mrb[0].mxu0 %v2159
        %v2227 = vpop.f32.mrb[0].mxu0
        %v2228 = vadd.f32 0.0, %v2227
        %v2229 = vpop.f32.mrb[0].mxu0
        %2230 = vdwg.mxu0
        %v2231 = vadd.f32 %v2141, %v2228
        %vm2232 = vcmask 73728
        %2233 = vst.msk [vmem:[%s405] sm:$0x1] %vm2232, %v2231
        %s2234 = sand.u32 %s291, 1
        %s2235 = scalar_lea.sflag [#allocation3], %s2234
        %s2236 = sand.u32 %s291, 1
        %s2237 = scalar_lea.vmem [#allocation2], %s2236
        // Predicated region
        $region69: #{convnet_forward.1} parent=67 // pred_check
          %p2238 = pneg %p301
        $region70: #{convnet_forward.1} parent=67 // pred_check_branch
          %2240 = sbr.rel (%p2238) target = $region72
        $region71: #{convnet_forward.1} parent=67 // pred_region
          %s2242 = ssub.s32 16, 16
          %2243 = vsyncadd %s2235, %s2242
          %s2244 = smul.addr %s26, 16
          %s2245 = scalar_lea.hbm %s12, %s2244
          %s2247 = sshll.u32 %s2237, 4
          %s2248 = int_to_ptr.vmem [resolvable:$true] %s2247
          %2250 = dma.vmem_to_hbm [thread:$0]  %s2248, 16, %s2245, %s2235
        $region72: #{convnet_forward.1} parent=67 // pred_fallthru
          _
      $region68: #{convnet_forward.1} parent=5 // pred_fallthru
        _
      %p2251 = scmp.le.s32.totalorder 2, %s21
      // Predicated region
      $region73: #{convnet_forward.1} parent=5 // pred_check
        %p2252 = pneg %p2251
      $region74: #{convnet_forward.1} parent=5 // pred_check_branch
        %2254 = sbr.rel (%p2252) target = $region76
      $region75: #{convnet_forward.1} parent=5 // pred_region
        %s2255 = ssub.s32 %s21, 2
        // Predicated region
        $region77: #{convnet_forward.1} parent=75 // pred_check
          %p2256 = pneg %p307
        $region78: #{convnet_forward.1} parent=75 // pred_check_branch
          %2258 = sbr.rel (%p2256) target = $region80
        $region79: #{convnet_forward.1} parent=75 // pred_region
          %s2259 = sand.u32 %s292, 1
          %s2260 = scalar_lea.sflag [#allocation3], %s2259
          %s2261 = sand.u32 %s292, 1
          %s2262 = scalar_lea.vmem [#allocation2], %s2261
          %2263 = dma.done %s2260, 16
        $region80: #{convnet_forward.1} parent=75 // pred_fallthru
          _
      $region76: #{convnet_forward.1} parent=5 // pred_fallthru
        _
    $region6: #{convnet_forward.1} parent=1 // loop_footer
      %s25 = sadd.s32 1, %s21
    $region7: #{convnet_forward.1} parent=1 // loop_footer_branch
      %20 = sbr.rel target = $region3
    $region8: #{convnet_forward.1} parent=1 // loop_exit
      _
    %2264 = vsyncpa [#allocation3], 1
    %s2265 = scalar_lea.sflag [#allocation3], 1
    %2266 = vsyncpa %s2265, 1

</llo_original>
